<compile_context>
chip_gen: v7x
topology: tpu7x:2x2x1
jax: 0.10.0
libtpu: 0.0.40
codegen_flags: <defaults>
</compile_context>

<pallas_src>
import functools
import math

import jax
import jax.numpy as jnp
from jax import lax
from jax.experimental import pallas as pl
from jax.experimental.pallas import tpu as pltpu


def _multi_layer_kernel(x_ref,
                        wq_ref, bq_ref, wk_ref, bk_ref, wv_ref, bv_ref,
                        wo_ref, bo_ref, w1_ref, b1_ref, w2_ref, b2_ref,
                        y_ref, o_sc, *, n_head, matmul_dtype):
    B, S, H = x_ref.shape
    dh = H // n_head
    f32 = jnp.float32

    # Whole (tiny) input resident in VMEM.
    x3d = x_ref[...].astype(f32)                       # [B, S, H]
    x0 = x3d[:, 0, :]                                  # [B, H] == x.permute(1,0,2)[0]

    def mm(a, w):        # activation @ resident weight (already matmul_dtype)
        return jnp.dot(a.astype(matmul_dtype), w, preferred_element_type=f32)

    def mm_nt(a, b):     # a @ b.T (both activations), contract last dims
        return lax.dot_general(a.astype(matmul_dtype), b.astype(matmul_dtype),
                               (((1,), (1,)), ((), ())),
                               preferred_element_type=f32)

    def linear(a, w_ref, b_ref):   # PyTorch Linear; w_ref holds W^T, bias f32
        return mm(a, w_ref[...]) + b_ref[...]

    # ---- Attention: only the s == 0 slab survives `self.mha(x, x, x)[0]`,
    # and attention never mixes across seq, so Q/K/V + attention + Wo run on
    # the single [B, H] slab.  1/sqrt(dh) is pre-folded into Wq/bq.
    q0 = linear(x0, wq_ref, bq_ref)                    # [B, H] (pre-scaled)
    k0 = linear(x0, wk_ref, bk_ref)
    v0 = linear(x0, wv_ref, bv_ref)

    for h in range(n_head):                            # static unroll (n_head small)
        sl = slice(h * dh, (h + 1) * dh)
        s_bb = mm_nt(q0[:, sl], k0[:, sl])             # [B, B]
        s_bb = s_bb - jnp.max(s_bb, axis=-1, keepdims=True)
        p = jnp.exp(s_bb)
        p = p * pl.reciprocal(jnp.sum(p, axis=-1, keepdims=True), approx=True)
        o_sc[:, sl] = mm(p, v0[:, sl])                 # head out at its lane slice

    # One full-K output projection instead of n_head tiny ones.
    mha0 = mm(o_sc[...], wo_ref[...]) + bo_ref[...]    # [B, H]

    # `x + self.mha(x, x, x)[0]`: broadcast mha0[b] over the seq axis, then
    # flatten to [B*S, H] (contiguous, layout-safe) for full-lane FFN matmuls.
    one = (x3d + mha0[:, None, :]).reshape(B * S, H)

    # ---- Residual feed-forward:  _2 = _1 + Linear(ReLU(Linear(_1))) -------
    ff = jnp.maximum(linear(one, w1_ref, b1_ref), 0.0)
    ff = linear(ff, w2_ref, b2_ref)
    y_ref[...] = (one + ff).reshape(B, S, H).astype(y_ref.dtype)


def multi_layer_forward(x, params, n_head, matmul_dtype=jnp.bfloat16):
    """x: [batch, seq, hidden]; params: 6 (W, b) pairs (q, k, v, mha-out, ff1, ff2).

    matmul_dtype=bf16 (default) feeds MXU-native operands with f32 accumulation;
    pass jnp.float32 for the tightest match to PyTorch f32 numerics.
    """
    B, S, H = x.shape
    dh = H // n_head
    scale = 1.0 / math.sqrt(dh)

    flat = [x]
    for i, (w, b) in enumerate(params):
        w = jnp.asarray(w, jnp.float32)
        b = jnp.asarray(b, jnp.float32)
        if i == 0:                                   # fold 1/sqrt(dh) into Wq/bq
            w = w * scale
            b = b * scale
        flat.append(w.T.astype(matmul_dtype))        # W^T -> [in, out], matmul dtype
        flat.append(b.reshape(1, b.shape[-1]))       # bias stays f32, [1, out]

    in_specs = [pl.BlockSpec(a.shape, lambda i, nd=a.ndim: (0,) * nd)
                for a in flat]
    out_spec = pl.BlockSpec((B, S, H), lambda i: (0, 0, 0))

    kernel = functools.partial(_multi_layer_kernel, n_head=n_head,
                               matmul_dtype=matmul_dtype)
    return pl.pallas_call(
        kernel,
        out_shape=jax.ShapeDtypeStruct((B, S, H), x.dtype),
        grid=(1,),
        in_specs=in_specs,
        out_specs=out_spec,
        scratch_shapes=[pltpu.VMEM((B, H), jnp.float32)],   # concat-of-heads slab
        compiler_params=pltpu.CompilerParams(
            dimension_semantics=("arbitrary",)),
    )(*flat)


def init_params(key, n_hidden):
    """Deterministic init mimicking nn.Linear's U(-1/sqrt(in), 1/sqrt(in))."""
    params = []
    bound = 1.0 / math.sqrt(n_hidden)
    for i in range(6):   # q, k, v, mha-out, ff1, ff2
        kw, kb = jax.random.split(jax.random.fold_in(key, i))
        w = jax.random.uniform(kw, (n_hidden, n_hidden), jnp.float32, -bound, bound)
        b = jax.random.uniform(kb, (n_hidden,), jnp.float32, -bound, bound)
        params.append((w, b))
    return params


def ref_forward(x, params, n_head):
    """Pure-JAX reference mirroring the PyTorch module exactly."""
    (wq, bq), (wk, bk), (wv, bv), (wo, bo), (w1, b1), (w2, b2) = params
    B, S, H = x.shape
    dh = H // n_head
    hp = jax.lax.Precision.HIGHEST

    def lin(t, w, b):
        return jnp.einsum('...i,oi->...o', t, w, precision=hp) + b

    xp = jnp.transpose(x, (1, 0, 2))              # [S, B, H]

    def transform(t, w, b):
        o = lin(t, w, b).reshape(S, B, n_head, dh)
        return jnp.transpose(o, (0, 2, 1, 3))     # [S, nh, B, dh]

    q = transform(xp, wq, bq)
    k = transform(xp, wk, bk)
    v = transform(xp, wv, bv)
    score = jnp.einsum('shbd,shcd->shbc', q, k, precision=hp) / math.sqrt(dh)
    p = jax.nn.softmax(score, axis=-1)
    o = jnp.einsum('shbc,shcd->shbd', p, v, precision=hp)
    o = jnp.transpose(o, (0, 2, 1, 3)).reshape(S, B, H)
    mha = lin(o, wo, bo)
    one = xp + mha[0]                             # broadcast of mha(...)[0]
    one = jnp.transpose(one, (1, 0, 2))           # [B, S, H]
    ff = lin(jnp.maximum(lin(one, w1, b1), 0.0), w2, b2)
    return one + ff


if __name__ == "__main__":
    key = jax.random.PRNGKey(0)
    B, S, H, NH = 8, 8, 128, 4                    # batch, seq_len, n_hidden, n_heads
    kx, kp = jax.random.split(key)
    x = jax.random.normal(kx, (B, S, H), jnp.float32)
    params = init_params(kp, H)

    y_ref = ref_forward(x, params, NH)

    # Default path: bf16 MXU operands, f32 accumulate (v6e/v7x native).
    y_bf = jax.block_until_ready(multi_layer_forward(x, params, NH))
    assert y_bf.shape == (B, S, H)
    err_bf = float(jnp.max(jnp.abs(y_bf - y_ref)))
    assert jnp.allclose(y_bf, y_ref, rtol=5e-2, atol=5e-2), err_bf

    # f32-matmul path (tightest PyTorch-f32 match).
    y_f32 = jax.block_until_ready(
        multi_layer_forward(x, params, NH, matmul_dtype=jnp.float32))
    err_f32 = float(jnp.max(jnp.abs(y_f32 - y_ref)))
    assert jnp.allclose(y_f32, y_ref, rtol=1e-2, atol=1e-2), err_f32

    print("KERNEL_OK")
</pallas_src>

<mosaic_0001>
module attributes {stable_mosaic.version = 11 : i64} {
  func.func @_multi_layer_kernel(%arg0: i32, %arg1: memref<8x8x128xf32, #tpu.memory_space<vmem>>, %arg2: memref<128x128xbf16, #tpu.memory_space<vmem>>, %arg3: memref<1x128xf32, #tpu.memory_space<vmem>>, %arg4: memref<128x128xbf16, #tpu.memory_space<vmem>>, %arg5: memref<1x128xf32, #tpu.memory_space<vmem>>, %arg6: memref<128x128xbf16, #tpu.memory_space<vmem>>, %arg7: memref<1x128xf32, #tpu.memory_space<vmem>>, %arg8: memref<128x128xbf16, #tpu.memory_space<vmem>>, %arg9: memref<1x128xf32, #tpu.memory_space<vmem>>, %arg10: memref<128x128xbf16, #tpu.memory_space<vmem>>, %arg11: memref<1x128xf32, #tpu.memory_space<vmem>>, %arg12: memref<128x128xbf16, #tpu.memory_space<vmem>>, %arg13: memref<1x128xf32, #tpu.memory_space<vmem>>, %arg14: memref<8x8x128xf32, #tpu.memory_space<vmem>>, %arg15: memref<8x128xf32, #tpu.memory_space<vmem>>) attributes {dimension_semantics = [#tpu.dimension_semantics<arbitrary>], iteration_bounds = array<i64: 1>, scalar_prefetch = 0 : i64, scratch_operands = 1 : i64, tpu.core_type = #tpu.core_type<tc>, window_params = [{pipeline_mode = #tpu.pipeline_mode<synchronous>, transform_indices = @transform_0, window_bounds = array<i64: 8, 8, 128>}, {pipeline_mode = #tpu.pipeline_mode<synchronous>, transform_indices = @transform_1, window_bounds = array<i64: 128, 128>}, {pipeline_mode = #tpu.pipeline_mode<synchronous>, transform_indices = @transform_2, window_bounds = array<i64: 1, 128>}, {pipeline_mode = #tpu.pipeline_mode<synchronous>, transform_indices = @transform_3, window_bounds = array<i64: 128, 128>}, {pipeline_mode = #tpu.pipeline_mode<synchronous>, transform_indices = @transform_4, window_bounds = array<i64: 1, 128>}, {pipeline_mode = #tpu.pipeline_mode<synchronous>, transform_indices = @transform_5, window_bounds = array<i64: 128, 128>}, {pipeline_mode = #tpu.pipeline_mode<synchronous>, transform_indices = @transform_6, window_bounds = array<i64: 1, 128>}, {pipeline_mode = #tpu.pipeline_mode<synchronous>, transform_indices = @transform_7, window_bounds = array<i64: 128, 128>}, {pipeline_mode = #tpu.pipeline_mode<synchronous>, transform_indices = @transform_8, window_bounds = array<i64: 1, 128>}, {pipeline_mode = #tpu.pipeline_mode<synchronous>, transform_indices = @transform_9, window_bounds = array<i64: 128, 128>}, {pipeline_mode = #tpu.pipeline_mode<synchronous>, transform_indices = @transform_10, window_bounds = array<i64: 1, 128>}, {pipeline_mode = #tpu.pipeline_mode<synchronous>, transform_indices = @transform_11, window_bounds = array<i64: 128, 128>}, {pipeline_mode = #tpu.pipeline_mode<synchronous>, transform_indices = @transform_12, window_bounds = array<i64: 1, 128>}, {pipeline_mode = #tpu.pipeline_mode<synchronous>, transform_indices = @transform_13, window_bounds = array<i64: 8, 8, 128>}]} {
    %c0 = arith.constant 0 : index
    %c0_0 = arith.constant 0 : index
    %c0_1 = arith.constant 0 : index
    %0 = vector.load %arg1[%c0, %c0_0, %c0_1] : memref<8x8x128xf32, #tpu.memory_space<vmem>>, vector<8x8x128xf32>
    %1 = vector.extract_strided_slice %0 {offsets = [0, 0, 0], sizes = [8, 1, 128], strides = [1, 1, 1]} : vector<8x8x128xf32> to vector<8x1x128xf32>
    %2 = vector.shape_cast %1 : vector<8x1x128xf32> to vector<8x128xf32>
    %c0_2 = arith.constant 0 : index
    %c0_3 = arith.constant 0 : index
    %3 = vector.load %arg2[%c0_2, %c0_3] : memref<128x128xbf16, #tpu.memory_space<vmem>>, vector<128x128xbf16>
    %4 = arith.truncf %2 : vector<8x128xf32> to vector<8x128xbf16>
    %cst = arith.constant dense<0.000000e+00> : vector<8x128xf32>
    %5 = tpu.matmul %4, %3, %cst {dimension_numbers = #tpu.dot_dimension_numbers<[1], [0], [0], [1], [0, 0, 1, 1], [], []>} : vector<8x128xbf16>, vector<128x128xbf16>, vector<8x128xf32> -> vector<8x128xf32>
    %c0_4 = arith.constant 0 : index
    %c0_5 = arith.constant 0 : index
    %6 = vector.load %arg3[%c0_4, %c0_5] : memref<1x128xf32, #tpu.memory_space<vmem>>, vector<1x128xf32>
    %7 = vector.broadcast %6 : vector<1x128xf32> to vector<8x128xf32>
    %8 = arith.addf %5, %7 : vector<8x128xf32>
    %c0_6 = arith.constant 0 : index
    %c0_7 = arith.constant 0 : index
    %9 = vector.load %arg4[%c0_6, %c0_7] : memref<128x128xbf16, #tpu.memory_space<vmem>>, vector<128x128xbf16>
    %10 = arith.truncf %2 : vector<8x128xf32> to vector<8x128xbf16>
    %cst_8 = arith.constant dense<0.000000e+00> : vector<8x128xf32>
    %11 = tpu.matmul %10, %9, %cst_8 {dimension_numbers = #tpu.dot_dimension_numbers<[1], [0], [0], [1], [0, 0, 1, 1], [], []>} : vector<8x128xbf16>, vector<128x128xbf16>, vector<8x128xf32> -> vector<8x128xf32>
    %c0_9 = arith.constant 0 : index
    %c0_10 = arith.constant 0 : index
    %12 = vector.load %arg5[%c0_9, %c0_10] : memref<1x128xf32, #tpu.memory_space<vmem>>, vector<1x128xf32>
    %13 = vector.broadcast %12 : vector<1x128xf32> to vector<8x128xf32>
    %14 = arith.addf %11, %13 : vector<8x128xf32>
    %c0_11 = arith.constant 0 : index
    %c0_12 = arith.constant 0 : index
    %15 = vector.load %arg6[%c0_11, %c0_12] : memref<128x128xbf16, #tpu.memory_space<vmem>>, vector<128x128xbf16>
    %16 = arith.truncf %2 : vector<8x128xf32> to vector<8x128xbf16>
    %cst_13 = arith.constant dense<0.000000e+00> : vector<8x128xf32>
    %17 = tpu.matmul %16, %15, %cst_13 {dimension_numbers = #tpu.dot_dimension_numbers<[1], [0], [0], [1], [0, 0, 1, 1], [], []>} : vector<8x128xbf16>, vector<128x128xbf16>, vector<8x128xf32> -> vector<8x128xf32>
    %c0_14 = arith.constant 0 : index
    %c0_15 = arith.constant 0 : index
    %18 = vector.load %arg7[%c0_14, %c0_15] : memref<1x128xf32, #tpu.memory_space<vmem>>, vector<1x128xf32>
    %19 = vector.broadcast %18 : vector<1x128xf32> to vector<8x128xf32>
    %20 = arith.addf %17, %19 : vector<8x128xf32>
    %21 = vector.extract_strided_slice %8 {offsets = [0, 0], sizes = [8, 32], strides = [1, 1]} : vector<8x128xf32> to vector<8x32xf32>
    %22 = vector.extract_strided_slice %14 {offsets = [0, 0], sizes = [8, 32], strides = [1, 1]} : vector<8x128xf32> to vector<8x32xf32>
    %23 = arith.truncf %21 : vector<8x32xf32> to vector<8x32xbf16>
    %24 = arith.truncf %22 : vector<8x32xf32> to vector<8x32xbf16>
    %cst_16 = arith.constant dense<0.000000e+00> : vector<8x8xf32>
    %25 = tpu.matmul %23, %24, %cst_16 {dimension_numbers = #tpu.dot_dimension_numbers<[1], [1], [0], [0], [0, 0, 1, 0], [], []>} : vector<8x32xbf16>, vector<8x32xbf16>, vector<8x8xf32> -> vector<8x8xf32>
    %cst_17 = arith.constant dense<0xFF800000> : vector<8xf32>
    %26 = vector.multi_reduction <maximumf>, %25, %cst_17 [1] : vector<8x8xf32> to vector<8xf32>
    %27 = vector.shape_cast %26 : vector<8xf32> to vector<8x1xf32>
    %28 = vector.broadcast %27 : vector<8x1xf32> to vector<8x8xf32>
    %29 = arith.subf %25, %28 : vector<8x8xf32>
    %30 = math.exp %29 : vector<8x8xf32>
    %cst_18 = arith.constant dense<0.000000e+00> : vector<8xf32>
    %31 = vector.multi_reduction <add>, %30, %cst_18 [1] : vector<8x8xf32> to vector<8xf32>
    %32 = vector.shape_cast %31 : vector<8xf32> to vector<8x1xf32>
    %33 = tpu.reciprocal %32 {approx = true} : vector<8x1xf32> -> vector<8x1xf32>
    %34 = vector.broadcast %33 : vector<8x1xf32> to vector<8x8xf32>
    %35 = arith.mulf %30, %34 : vector<8x8xf32>
    %36 = vector.extract_strided_slice %20 {offsets = [0, 0], sizes = [8, 32], strides = [1, 1]} : vector<8x128xf32> to vector<8x32xf32>
    %37 = arith.truncf %35 : vector<8x8xf32> to vector<8x8xbf16>
    %cst_19 = arith.constant dense<0.000000e+00> : vector<8x32xf32>
    %38 = tpu.matmul %37, %36, %cst_19 {dimension_numbers = #tpu.dot_dimension_numbers<[1], [0], [0], [1], [0, 0, 1, 1], [], []>} : vector<8x8xbf16>, vector<8x32xf32>, vector<8x32xf32> -> vector<8x32xf32>
    %c0_20 = arith.constant 0 : index
    %c0_21 = arith.constant 0 : index
    %39 = vector.load %arg15[%c0_20, %c0_21] : memref<8x128xf32, #tpu.memory_space<vmem>>, vector<8x32xf32>
    tpu.vector_store %arg15[%c0_20, %c0_21], %38 {strides = array<i32>} : memref<8x128xf32, #tpu.memory_space<vmem>>, vector<8x32xf32>,
    %40 = vector.extract_strided_slice %8 {offsets = [0, 32], sizes = [8, 32], strides = [1, 1]} : vector<8x128xf32> to vector<8x32xf32>
    %41 = vector.extract_strided_slice %14 {offsets = [0, 32], sizes = [8, 32], strides = [1, 1]} : vector<8x128xf32> to vector<8x32xf32>
    %42 = arith.truncf %40 : vector<8x32xf32> to vector<8x32xbf16>
    %43 = arith.truncf %41 : vector<8x32xf32> to vector<8x32xbf16>
    %cst_22 = arith.constant dense<0.000000e+00> : vector<8x8xf32>
    %44 = tpu.matmul %42, %43, %cst_22 {dimension_numbers = #tpu.dot_dimension_numbers<[1], [1], [0], [0], [0, 0, 1, 0], [], []>} : vector<8x32xbf16>, vector<8x32xbf16>, vector<8x8xf32> -> vector<8x8xf32>
    %cst_23 = arith.constant dense<0xFF800000> : vector<8xf32>
    %45 = vector.multi_reduction <maximumf>, %44, %cst_23 [1] : vector<8x8xf32> to vector<8xf32>
    %46 = vector.shape_cast %45 : vector<8xf32> to vector<8x1xf32>
    %47 = vector.broadcast %46 : vector<8x1xf32> to vector<8x8xf32>
    %48 = arith.subf %44, %47 : vector<8x8xf32>
    %49 = math.exp %48 : vector<8x8xf32>
    %cst_24 = arith.constant dense<0.000000e+00> : vector<8xf32>
    %50 = vector.multi_reduction <add>, %49, %cst_24 [1] : vector<8x8xf32> to vector<8xf32>
    %51 = vector.shape_cast %50 : vector<8xf32> to vector<8x1xf32>
    %52 = tpu.reciprocal %51 {approx = true} : vector<8x1xf32> -> vector<8x1xf32>
    %53 = vector.broadcast %52 : vector<8x1xf32> to vector<8x8xf32>
    %54 = arith.mulf %49, %53 : vector<8x8xf32>
    %55 = vector.extract_strided_slice %20 {offsets = [0, 32], sizes = [8, 32], strides = [1, 1]} : vector<8x128xf32> to vector<8x32xf32>
    %56 = arith.truncf %54 : vector<8x8xf32> to vector<8x8xbf16>
    %cst_25 = arith.constant dense<0.000000e+00> : vector<8x32xf32>
    %57 = tpu.matmul %56, %55, %cst_25 {dimension_numbers = #tpu.dot_dimension_numbers<[1], [0], [0], [1], [0, 0, 1, 1], [], []>} : vector<8x8xbf16>, vector<8x32xf32>, vector<8x32xf32> -> vector<8x32xf32>
    %c0_26 = arith.constant 0 : index
    %c32 = arith.constant 32 : index
    %58 = vector.load %arg15[%c0_26, %c32] : memref<8x128xf32, #tpu.memory_space<vmem>>, vector<8x32xf32>
    tpu.vector_store %arg15[%c0_26, %c32], %57 {strides = array<i32>} : memref<8x128xf32, #tpu.memory_space<vmem>>, vector<8x32xf32>,
    %59 = vector.extract_strided_slice %8 {offsets = [0, 64], sizes = [8, 32], strides = [1, 1]} : vector<8x128xf32> to vector<8x32xf32>
    %60 = vector.extract_strided_slice %14 {offsets = [0, 64], sizes = [8, 32], strides = [1, 1]} : vector<8x128xf32> to vector<8x32xf32>
    %61 = arith.truncf %59 : vector<8x32xf32> to vector<8x32xbf16>
    %62 = arith.truncf %60 : vector<8x32xf32> to vector<8x32xbf16>
    %cst_27 = arith.constant dense<0.000000e+00> : vector<8x8xf32>
    %63 = tpu.matmul %61, %62, %cst_27 {dimension_numbers = #tpu.dot_dimension_numbers<[1], [1], [0], [0], [0, 0, 1, 0], [], []>} : vector<8x32xbf16>, vector<8x32xbf16>, vector<8x8xf32> -> vector<8x8xf32>
    %cst_28 = arith.constant dense<0xFF800000> : vector<8xf32>
    %64 = vector.multi_reduction <maximumf>, %63, %cst_28 [1] : vector<8x8xf32> to vector<8xf32>
    %65 = vector.shape_cast %64 : vector<8xf32> to vector<8x1xf32>
    %66 = vector.broadcast %65 : vector<8x1xf32> to vector<8x8xf32>
    %67 = arith.subf %63, %66 : vector<8x8xf32>
    %68 = math.exp %67 : vector<8x8xf32>
    %cst_29 = arith.constant dense<0.000000e+00> : vector<8xf32>
    %69 = vector.multi_reduction <add>, %68, %cst_29 [1] : vector<8x8xf32> to vector<8xf32>
    %70 = vector.shape_cast %69 : vector<8xf32> to vector<8x1xf32>
    %71 = tpu.reciprocal %70 {approx = true} : vector<8x1xf32> -> vector<8x1xf32>
    %72 = vector.broadcast %71 : vector<8x1xf32> to vector<8x8xf32>
    %73 = arith.mulf %68, %72 : vector<8x8xf32>
    %74 = vector.extract_strided_slice %20 {offsets = [0, 64], sizes = [8, 32], strides = [1, 1]} : vector<8x128xf32> to vector<8x32xf32>
    %75 = arith.truncf %73 : vector<8x8xf32> to vector<8x8xbf16>
    %cst_30 = arith.constant dense<0.000000e+00> : vector<8x32xf32>
    %76 = tpu.matmul %75, %74, %cst_30 {dimension_numbers = #tpu.dot_dimension_numbers<[1], [0], [0], [1], [0, 0, 1, 1], [], []>} : vector<8x8xbf16>, vector<8x32xf32>, vector<8x32xf32> -> vector<8x32xf32>
    %c0_31 = arith.constant 0 : index
    %c64 = arith.constant 64 : index
    %77 = vector.load %arg15[%c0_31, %c64] : memref<8x128xf32, #tpu.memory_space<vmem>>, vector<8x32xf32>
    tpu.vector_store %arg15[%c0_31, %c64], %76 {strides = array<i32>} : memref<8x128xf32, #tpu.memory_space<vmem>>, vector<8x32xf32>,
    %78 = vector.extract_strided_slice %8 {offsets = [0, 96], sizes = [8, 32], strides = [1, 1]} : vector<8x128xf32> to vector<8x32xf32>
    %79 = vector.extract_strided_slice %14 {offsets = [0, 96], sizes = [8, 32], strides = [1, 1]} : vector<8x128xf32> to vector<8x32xf32>
    %80 = arith.truncf %78 : vector<8x32xf32> to vector<8x32xbf16>
    %81 = arith.truncf %79 : vector<8x32xf32> to vector<8x32xbf16>
    %cst_32 = arith.constant dense<0.000000e+00> : vector<8x8xf32>
    %82 = tpu.matmul %80, %81, %cst_32 {dimension_numbers = #tpu.dot_dimension_numbers<[1], [1], [0], [0], [0, 0, 1, 0], [], []>} : vector<8x32xbf16>, vector<8x32xbf16>, vector<8x8xf32> -> vector<8x8xf32>
    %cst_33 = arith.constant dense<0xFF800000> : vector<8xf32>
    %83 = vector.multi_reduction <maximumf>, %82, %cst_33 [1] : vector<8x8xf32> to vector<8xf32>
    %84 = vector.shape_cast %83 : vector<8xf32> to vector<8x1xf32>
    %85 = vector.broadcast %84 : vector<8x1xf32> to vector<8x8xf32>
    %86 = arith.subf %82, %85 : vector<8x8xf32>
    %87 = math.exp %86 : vector<8x8xf32>
    %cst_34 = arith.constant dense<0.000000e+00> : vector<8xf32>
    %88 = vector.multi_reduction <add>, %87, %cst_34 [1] : vector<8x8xf32> to vector<8xf32>
    %89 = vector.shape_cast %88 : vector<8xf32> to vector<8x1xf32>
    %90 = tpu.reciprocal %89 {approx = true} : vector<8x1xf32> -> vector<8x1xf32>
    %91 = vector.broadcast %90 : vector<8x1xf32> to vector<8x8xf32>
    %92 = arith.mulf %87, %91 : vector<8x8xf32>
    %93 = vector.extract_strided_slice %20 {offsets = [0, 96], sizes = [8, 32], strides = [1, 1]} : vector<8x128xf32> to vector<8x32xf32>
    %94 = arith.truncf %92 : vector<8x8xf32> to vector<8x8xbf16>
    %cst_35 = arith.constant dense<0.000000e+00> : vector<8x32xf32>
    %95 = tpu.matmul %94, %93, %cst_35 {dimension_numbers = #tpu.dot_dimension_numbers<[1], [0], [0], [1], [0, 0, 1, 1], [], []>} : vector<8x8xbf16>, vector<8x32xf32>, vector<8x32xf32> -> vector<8x32xf32>
    %c0_36 = arith.constant 0 : index
    %c96 = arith.constant 96 : index
    %96 = vector.load %arg15[%c0_36, %c96] : memref<8x128xf32, #tpu.memory_space<vmem>>, vector<8x32xf32>
    tpu.vector_store %arg15[%c0_36, %c96], %95 {strides = array<i32>} : memref<8x128xf32, #tpu.memory_space<vmem>>, vector<8x32xf32>,
    %c0_37 = arith.constant 0 : index
    %c0_38 = arith.constant 0 : index
    %97 = vector.load %arg15[%c0_37, %c0_38] : memref<8x128xf32, #tpu.memory_space<vmem>>, vector<8x128xf32>
    %c0_39 = arith.constant 0 : index
    %c0_40 = arith.constant 0 : index
    %98 = vector.load %arg8[%c0_39, %c0_40] : memref<128x128xbf16, #tpu.memory_space<vmem>>, vector<128x128xbf16>
    %99 = arith.truncf %97 : vector<8x128xf32> to vector<8x128xbf16>
    %cst_41 = arith.constant dense<0.000000e+00> : vector<8x128xf32>
    %100 = tpu.matmul %99, %98, %cst_41 {dimension_numbers = #tpu.dot_dimension_numbers<[1], [0], [0], [1], [0, 0, 1, 1], [], []>} : vector<8x128xbf16>, vector<128x128xbf16>, vector<8x128xf32> -> vector<8x128xf32>
    %c0_42 = arith.constant 0 : index
    %c0_43 = arith.constant 0 : index
    %101 = vector.load %arg9[%c0_42, %c0_43] : memref<1x128xf32, #tpu.memory_space<vmem>>, vector<1x128xf32>
    %102 = vector.broadcast %101 : vector<1x128xf32> to vector<8x128xf32>
    %103 = arith.addf %100, %102 : vector<8x128xf32>
    %104 = vector.shape_cast %103 : vector<8x128xf32> to vector<8x1x128xf32>
    %105 = vector.broadcast %104 : vector<8x1x128xf32> to vector<8x8x128xf32>
    %106 = arith.addf %0, %105 : vector<8x8x128xf32>
    %107 = vector.shape_cast %106 : vector<8x8x128xf32> to vector<64x128xf32>
    %c0_44 = arith.constant 0 : index
    %c0_45 = arith.constant 0 : index
    %108 = vector.load %arg10[%c0_44, %c0_45] : memref<128x128xbf16, #tpu.memory_space<vmem>>, vector<128x128xbf16>
    %109 = arith.truncf %107 : vector<64x128xf32> to vector<64x128xbf16>
    %cst_46 = arith.constant dense<0.000000e+00> : vector<64x128xf32>
    %110 = tpu.matmul %109, %108, %cst_46 {dimension_numbers = #tpu.dot_dimension_numbers<[1], [0], [0], [1], [0, 0, 1, 1], [], []>} : vector<64x128xbf16>, vector<128x128xbf16>, vector<64x128xf32> -> vector<64x128xf32>
    %c0_47 = arith.constant 0 : index
    %c0_48 = arith.constant 0 : index
    %111 = vector.load %arg11[%c0_47, %c0_48] : memref<1x128xf32, #tpu.memory_space<vmem>>, vector<1x128xf32>
    %112 = vector.broadcast %111 : vector<1x128xf32> to vector<64x128xf32>
    %113 = arith.addf %110, %112 : vector<64x128xf32>
    %cst_49 = arith.constant 0.000000e+00 : f32
    %114 = vector.broadcast %cst_49 : f32 to vector<64x128xf32>
    %115 = arith.maximumf %113, %114 : vector<64x128xf32>
    %c0_50 = arith.constant 0 : index
    %c0_51 = arith.constant 0 : index
    %116 = vector.load %arg12[%c0_50, %c0_51] : memref<128x128xbf16, #tpu.memory_space<vmem>>, vector<128x128xbf16>
    %117 = arith.truncf %115 : vector<64x128xf32> to vector<64x128xbf16>
    %cst_52 = arith.constant dense<0.000000e+00> : vector<64x128xf32>
    %118 = tpu.matmul %117, %116, %cst_52 {dimension_numbers = #tpu.dot_dimension_numbers<[1], [0], [0], [1], [0, 0, 1, 1], [], []>} : vector<64x128xbf16>, vector<128x128xbf16>, vector<64x128xf32> -> vector<64x128xf32>
    %c0_53 = arith.constant 0 : index
    %c0_54 = arith.constant 0 : index
    %119 = vector.load %arg13[%c0_53, %c0_54] : memref<1x128xf32, #tpu.memory_space<vmem>>, vector<1x128xf32>
    %120 = vector.broadcast %119 : vector<1x128xf32> to vector<64x128xf32>
    %121 = arith.addf %118, %120 : vector<64x128xf32>
    %122 = arith.addf %107, %121 : vector<64x128xf32>
    %123 = vector.shape_cast %122 : vector<64x128xf32> to vector<8x8x128xf32>
    %c0_55 = arith.constant 0 : index
    %c0_56 = arith.constant 0 : index
    %c0_57 = arith.constant 0 : index
    %124 = vector.load %arg14[%c0_55, %c0_56, %c0_57] : memref<8x8x128xf32, #tpu.memory_space<vmem>>, vector<8x8x128xf32>
    tpu.vector_store %arg14[%c0_55, %c0_56, %c0_57], %123 {strides = array<i32>} : memref<8x8x128xf32, #tpu.memory_space<vmem>>, vector<8x8x128xf32>,
    return
  }
  func.func @transform_0(%arg0: i32) -> (i32, i32, i32) {
    %c0_i32 = arith.constant 0 : i32
    %c0_i32_0 = arith.constant 0 : i32
    %c0_i32_1 = arith.constant 0 : i32
    %c0_i32_2 = arith.constant 0 : i32
    return %c0_i32, %c0_i32_0, %c0_i32_1 : i32, i32, i32
  }
  func.func @transform_1(%arg0: i32) -> (i32, i32) {
    %c0_i32 = arith.constant 0 : i32
    %c0_i32_0 = arith.constant 0 : i32
    %c0_i32_1 = arith.constant 0 : i32
    return %c0_i32, %c0_i32_0 : i32, i32
  }
  func.func @transform_2(%arg0: i32) -> (i32, i32) {
    %c0_i32 = arith.constant 0 : i32
    %c0_i32_0 = arith.constant 0 : i32
    %c0_i32_1 = arith.constant 0 : i32
    return %c0_i32, %c0_i32_0 : i32, i32
  }
  func.func @transform_3(%arg0: i32) -> (i32, i32) {
    %c0_i32 = arith.constant 0 : i32
    %c0_i32_0 = arith.constant 0 : i32
    %c0_i32_1 = arith.constant 0 : i32
    return %c0_i32, %c0_i32_0 : i32, i32
  }
  func.func @transform_4(%arg0: i32) -> (i32, i32) {
    %c0_i32 = arith.constant 0 : i32
    %c0_i32_0 = arith.constant 0 : i32
    %c0_i32_1 = arith.constant 0 : i32
    return %c0_i32, %c0_i32_0 : i32, i32
  }
  func.func @transform_5(%arg0: i32) -> (i32, i32) {
    %c0_i32 = arith.constant 0 : i32
    %c0_i32_0 = arith.constant 0 : i32
    %c0_i32_1 = arith.constant 0 : i32
    return %c0_i32, %c0_i32_0 : i32, i32
  }
  func.func @transform_6(%arg0: i32) -> (i32, i32) {
    %c0_i32 = arith.constant 0 : i32
    %c0_i32_0 = arith.constant 0 : i32
    %c0_i32_1 = arith.constant 0 : i32
    return %c0_i32, %c0_i32_0 : i32, i32
  }
  func.func @transform_7(%arg0: i32) -> (i32, i32) {
    %c0_i32 = arith.constant 0 : i32
    %c0_i32_0 = arith.constant 0 : i32
    %c0_i32_1 = arith.constant 0 : i32
    return %c0_i32, %c0_i32_0 : i32, i32
  }
  func.func @transform_8(%arg0: i32) -> (i32, i32) {
    %c0_i32 = arith.constant 0 : i32
    %c0_i32_0 = arith.constant 0 : i32
    %c0_i32_1 = arith.constant 0 : i32
    return %c0_i32, %c0_i32_0 : i32, i32
  }
  func.func @transform_9(%arg0: i32) -> (i32, i32) {
    %c0_i32 = arith.constant 0 : i32
    %c0_i32_0 = arith.constant 0 : i32
    %c0_i32_1 = arith.constant 0 : i32
    return %c0_i32, %c0_i32_0 : i32, i32
  }
  func.func @transform_10(%arg0: i32) -> (i32, i32) {
    %c0_i32 = arith.constant 0 : i32
    %c0_i32_0 = arith.constant 0 : i32
    %c0_i32_1 = arith.constant 0 : i32
    return %c0_i32, %c0_i32_0 : i32, i32
  }
  func.func @transform_11(%arg0: i32) -> (i32, i32) {
    %c0_i32 = arith.constant 0 : i32
    %c0_i32_0 = arith.constant 0 : i32
    %c0_i32_1 = arith.constant 0 : i32
    return %c0_i32, %c0_i32_0 : i32, i32
  }
  func.func @transform_12(%arg0: i32) -> (i32, i32) {
    %c0_i32 = arith.constant 0 : i32
    %c0_i32_0 = arith.constant 0 : i32
    %c0_i32_1 = arith.constant 0 : i32
    return %c0_i32, %c0_i32_0 : i32, i32
  }
  func.func @transform_13(%arg0: i32) -> (i32, i32, i32) {
    %c0_i32 = arith.constant 0 : i32
    %c0_i32_0 = arith.constant 0 : i32
    %c0_i32_1 = arith.constant 0 : i32
    %c0_i32_2 = arith.constant 0 : i32
    return %c0_i32, %c0_i32_0, %c0_i32_1 : i32, i32, i32
  }
}

</mosaic_0001>

<llo_original>
// kernel: tpu_custom_call.1
$region0: #{tpu_custom_call.1}
  #allocation0 [shape = 'u32[]', space=smem, size = 0x4, offset = 0x4, fixed_abs, tag = 'smem constant byte address 0x4 - core index']
  #allocation1 [shape = 'u32[144,128]{1,0:T(1,128)}', space=vmem, size = 0x12000, scoped, tag = 'internal scratch']
  #allocation2 [shape = 'f32[8,128]{1,0:T(8,128)}', space=vmem, size = 0x1000, scoped, tag = 'scratch operand']
  %s0 = inlined_call_operand.hbm [shape: f32[8,8,128], index: 0, kind: input, shape index: {}]
  %s1 = inlined_call_operand.hbm [shape: bf16[128,128], index: 1, kind: input, shape index: {}]
  %s2 = inlined_call_operand.vmem [shape: f32[1,128], index: 2, kind: input, shape index: {}]
  %s3 = inlined_call_operand.hbm [shape: bf16[128,128], index: 3, kind: input, shape index: {}]
  %s4 = inlined_call_operand.vmem [shape: f32[1,128], index: 4, kind: input, shape index: {}]
  %s5 = inlined_call_operand.hbm [shape: bf16[128,128], index: 5, kind: input, shape index: {}]
  %s6 = inlined_call_operand.vmem [shape: f32[1,128], index: 6, kind: input, shape index: {}]
  %s7 = inlined_call_operand.hbm [shape: bf16[128,128], index: 7, kind: input, shape index: {}]
  %s8 = inlined_call_operand.vmem [shape: f32[1,128], index: 8, kind: input, shape index: {}]
  %s9 = inlined_call_operand.hbm [shape: bf16[128,128], index: 9, kind: input, shape index: {}]
  %s10 = inlined_call_operand.vmem [shape: f32[1,128], index: 10, kind: input, shape index: {}]
  %s11 = inlined_call_operand.hbm [shape: bf16[128,128], index: 11, kind: input, shape index: {}]
  %s12 = inlined_call_operand.vmem [shape: f32[1,128], index: 12, kind: input, shape index: {}]
  %s13 = inlined_call_operand.hbm [shape: f32[8,8,128], index: 13, kind: output, shape index: {}]
  %s14 = sld [smem:[#allocation0]]
  $region90: #{tpu_custom_call.1} parent=0
    _
  %s16 = ssub.s32 1, %s14
  %s17 = scalar_select 0, %s16, %s14
  $region1: #{tpu_custom_call.1} parent=0
    #allocation3 [shape = 'u8[32768]{0}', space=vmem, size = 0x8000, scoped, tag = 'input window, operand 0, single buffered']
    #allocation4 [shape = 's32[1]{0}', space=sflag, size = 0x4, scoped, tag = 'scoped memory for tpu_custom_call.1']
    #allocation5 [shape = 's32[1]{0}', space=sflag, size = 0x4, scoped, tag = 'scoped memory for tpu_custom_call.1']
    #allocation6 [shape = 'u8[32768]{0}', space=vmem, size = 0x8000, scoped, tag = 'input window, operand 1, single buffered']
    #allocation7 [shape = 's32[1]{0}', space=sflag, size = 0x4, scoped, tag = 'scoped memory for tpu_custom_call.1']
    #allocation8 [shape = 'u8[32768]{0}', space=vmem, size = 0x8000, scoped, tag = 'input window, operand 3, single buffered']
    #allocation9 [shape = 'u8[32768]{0}', space=vmem, size = 0x8000, scoped, tag = 'input window, operand 5, single buffered']
    #allocation10 [shape = 's32[1]{0}', space=sflag, size = 0x4, scoped, tag = 'scoped memory for tpu_custom_call.1']
    #allocation11 [shape = 'u8[32768]{0}', space=vmem, size = 0x8000, scoped, tag = 'input window, operand 7, single buffered']
    #allocation12 [shape = 'u8[32768]{0}', space=vmem, size = 0x8000, scoped, tag = 'input window, operand 9, single buffered']
    #allocation13 [shape = 's32[1]{0}', space=sflag, size = 0x4, scoped, tag = 'scoped memory for tpu_custom_call.1']
    #allocation14 [shape = 'u8[32768]{0}', space=vmem, size = 0x8000, scoped, tag = 'input window, operand 11, single buffered']
    #allocation15 [shape = 'u8[32768]{0}', space=vmem, size = 0x8000, scoped, tag = 'output window, operand 0, single buffered']
    %18 = vsyncpa [#allocation4], 0
    %19 = vsyncpa [#allocation7], 0
    %20 = vsyncpa [#allocation10], 0
    %21 = vsyncpa [#allocation13], 0
    %22 = vsyncpa [#allocation5], 0
    // Predicated region
    $region2: #{tpu_custom_call.1} parent=1 // pred_check
      _
    $region3: #{tpu_custom_call.1} parent=1 // pred_check_branch
      %24 = sbr.rel (0) target = $region5
    $region4: #{tpu_custom_call.1} parent=1 // pred_region
      %s26 = ssub.s32 1024, 1024
      %27 = vsyncadd [#allocation4], %s26
      %s28 = sshll.u32 [#allocation3], 4
      %s29 = int_to_ptr.vmem [resolvable:$true] %s28
      %34 = dma.hbm_to_vmem [thread:$0]  %s0, 1024, %s29, [#allocation4], 128, 128, 8
    $region5: #{tpu_custom_call.1} parent=1 // pred_fallthru
      _
    // Predicated region
    $region6: #{tpu_custom_call.1} parent=1 // pred_check
      _
    $region7: #{tpu_custom_call.1} parent=1 // pred_check_branch
      %36 = sbr.rel (0) target = $region9
    $region8: #{tpu_custom_call.1} parent=1 // pred_region
      %s38 = ssub.s32 1024, 1024
      %39 = vsyncadd [#allocation7], %s38
      %s40 = sshll.u32 [#allocation6], 4
      %s41 = int_to_ptr.vmem [resolvable:$true] %s40
      %46 = dma.hbm_to_vmem [thread:$0]  %s1, 1024, %s41, [#allocation7], 64, 64, 4
    $region9: #{tpu_custom_call.1} parent=1 // pred_fallthru
      _
    // Predicated region
    $region10: #{tpu_custom_call.1} parent=1 // pred_check
      _
    $region11: #{tpu_custom_call.1} parent=1 // pred_check_branch
      %48 = sbr.rel (0) target = $region13
    $region12: #{tpu_custom_call.1} parent=1 // pred_region
      _
    $region13: #{tpu_custom_call.1} parent=1 // pred_fallthru
      _
    // Predicated region
    $region14: #{tpu_custom_call.1} parent=1 // pred_check
      _
    $region15: #{tpu_custom_call.1} parent=1 // pred_check_branch
      %50 = sbr.rel (0) target = $region17
    $region16: #{tpu_custom_call.1} parent=1 // pred_region
      %s52 = ssub.s32 1024, 1024
      %53 = vsyncadd [#allocation7], %s52
      %s54 = sshll.u32 [#allocation8], 4
      %s55 = int_to_ptr.vmem [resolvable:$true] %s54
      %60 = dma.hbm_to_vmem [thread:$0]  %s3, 1024, %s55, [#allocation7], 64, 64, 4
    $region17: #{tpu_custom_call.1} parent=1 // pred_fallthru
      _
    // Predicated region
    $region18: #{tpu_custom_call.1} parent=1 // pred_check
      _
    $region19: #{tpu_custom_call.1} parent=1 // pred_check_branch
      %62 = sbr.rel (0) target = $region21
    $region20: #{tpu_custom_call.1} parent=1 // pred_region
      _
    $region21: #{tpu_custom_call.1} parent=1 // pred_fallthru
      _
    // Predicated region
    $region22: #{tpu_custom_call.1} parent=1 // pred_check
      _
    $region23: #{tpu_custom_call.1} parent=1 // pred_check_branch
      %64 = sbr.rel (0) target = $region25
    $region24: #{tpu_custom_call.1} parent=1 // pred_region
      %s66 = ssub.s32 1024, 1024
      %67 = vsyncadd [#allocation10], %s66
      %s68 = sshll.u32 [#allocation9], 4
      %s69 = int_to_ptr.vmem [resolvable:$true] %s68
      %74 = dma.hbm_to_vmem [thread:$0]  %s5, 1024, %s69, [#allocation10], 64, 64, 4
    $region25: #{tpu_custom_call.1} parent=1 // pred_fallthru
      _
    // Predicated region
    $region26: #{tpu_custom_call.1} parent=1 // pred_check
      _
    $region27: #{tpu_custom_call.1} parent=1 // pred_check_branch
      %76 = sbr.rel (0) target = $region29
    $region28: #{tpu_custom_call.1} parent=1 // pred_region
      _
    $region29: #{tpu_custom_call.1} parent=1 // pred_fallthru
      _
    // Predicated region
    $region30: #{tpu_custom_call.1} parent=1 // pred_check
      _
    $region31: #{tpu_custom_call.1} parent=1 // pred_check_branch
      %78 = sbr.rel (0) target = $region33
    $region32: #{tpu_custom_call.1} parent=1 // pred_region
      %s80 = ssub.s32 1024, 1024
      %81 = vsyncadd [#allocation10], %s80
      %s82 = sshll.u32 [#allocation11], 4
      %s83 = int_to_ptr.vmem [resolvable:$true] %s82
      %88 = dma.hbm_to_vmem [thread:$0]  %s7, 1024, %s83, [#allocation10], 64, 64, 4
    $region33: #{tpu_custom_call.1} parent=1 // pred_fallthru
      _
    // Predicated region
    $region34: #{tpu_custom_call.1} parent=1 // pred_check
      _
    $region35: #{tpu_custom_call.1} parent=1 // pred_check_branch
      %90 = sbr.rel (0) target = $region37
    $region36: #{tpu_custom_call.1} parent=1 // pred_region
      _
    $region37: #{tpu_custom_call.1} parent=1 // pred_fallthru
      _
    // Predicated region
    $region38: #{tpu_custom_call.1} parent=1 // pred_check
      _
    $region39: #{tpu_custom_call.1} parent=1 // pred_check_branch
      %92 = sbr.rel (0) target = $region41
    $region40: #{tpu_custom_call.1} parent=1 // pred_region
      %s94 = ssub.s32 1024, 1024
      %95 = vsyncadd [#allocation13], %s94
      %s96 = sshll.u32 [#allocation12], 4
      %s97 = int_to_ptr.vmem [resolvable:$true] %s96
      %102 = dma.hbm_to_vmem [thread:$0]  %s9, 1024, %s97, [#allocation13], 64, 64, 4
    $region41: #{tpu_custom_call.1} parent=1 // pred_fallthru
      _
    // Predicated region
    $region42: #{tpu_custom_call.1} parent=1 // pred_check
      _
    $region43: #{tpu_custom_call.1} parent=1 // pred_check_branch
      %104 = sbr.rel (0) target = $region45
    $region44: #{tpu_custom_call.1} parent=1 // pred_region
      _
    $region45: #{tpu_custom_call.1} parent=1 // pred_fallthru
      _
    // Predicated region
    $region46: #{tpu_custom_call.1} parent=1 // pred_check
      _
    $region47: #{tpu_custom_call.1} parent=1 // pred_check_branch
      %106 = sbr.rel (0) target = $region49
    $region48: #{tpu_custom_call.1} parent=1 // pred_region
      %s108 = ssub.s32 1024, 1024
      %109 = vsyncadd [#allocation13], %s108
      %s110 = sshll.u32 [#allocation14], 4
      %s111 = int_to_ptr.vmem [resolvable:$true] %s110
      %116 = dma.hbm_to_vmem [thread:$0]  %s11, 1024, %s111, [#allocation13], 64, 64, 4
    $region49: #{tpu_custom_call.1} parent=1 // pred_fallthru
      _
    // Predicated region
    $region50: #{tpu_custom_call.1} parent=1 // pred_check
      _
    $region51: #{tpu_custom_call.1} parent=1 // pred_check_branch
      %118 = sbr.rel (0) target = $region53
    $region52: #{tpu_custom_call.1} parent=1 // pred_region
      _
    $region53: #{tpu_custom_call.1} parent=1 // pred_fallthru
      _
    // Predicated region
    $region54: #{tpu_custom_call.1} parent=1 // pred_check
      _
    $region55: #{tpu_custom_call.1} parent=1 // pred_check_branch
      %120 = sbr.rel (0) target = $region57
    $region56: #{tpu_custom_call.1} parent=1 // pred_region
      %121 = dma.done [#allocation4], 1024
    $region57: #{tpu_custom_call.1} parent=1 // pred_fallthru
      _
    // Predicated region
    $region58: #{tpu_custom_call.1} parent=1 // pred_check
      _
    $region59: #{tpu_custom_call.1} parent=1 // pred_check_branch
      %123 = sbr.rel (0) target = $region61
    $region60: #{tpu_custom_call.1} parent=1 // pred_region
      %124 = dma.done [#allocation7], 1024
    $region61: #{tpu_custom_call.1} parent=1 // pred_fallthru
      _
    // Predicated region
    $region62: #{tpu_custom_call.1} parent=1 // pred_check
      _
    $region63: #{tpu_custom_call.1} parent=1 // pred_check_branch
      %126 = sbr.rel (0) target = $region65
    $region64: #{tpu_custom_call.1} parent=1 // pred_region
      %127 = dma.done [#allocation7], 1024
    $region65: #{tpu_custom_call.1} parent=1 // pred_fallthru
      _
    // Predicated region
    $region66: #{tpu_custom_call.1} parent=1 // pred_check
      _
    $region67: #{tpu_custom_call.1} parent=1 // pred_check_branch
      %129 = sbr.rel (0) target = $region69
    $region68: #{tpu_custom_call.1} parent=1 // pred_region
      %130 = dma.done [#allocation10], 1024
    $region69: #{tpu_custom_call.1} parent=1 // pred_fallthru
      _
    // Predicated region
    $region70: #{tpu_custom_call.1} parent=1 // pred_check
      _
    $region71: #{tpu_custom_call.1} parent=1 // pred_check_branch
      %132 = sbr.rel (0) target = $region73
    $region72: #{tpu_custom_call.1} parent=1 // pred_region
      %133 = dma.done [#allocation10], 1024
    $region73: #{tpu_custom_call.1} parent=1 // pred_fallthru
      _
    // Predicated region
    $region74: #{tpu_custom_call.1} parent=1 // pred_check
      _
    $region75: #{tpu_custom_call.1} parent=1 // pred_check_branch
      %135 = sbr.rel (0) target = $region77
    $region76: #{tpu_custom_call.1} parent=1 // pred_region
      %136 = dma.done [#allocation13], 1024
    $region77: #{tpu_custom_call.1} parent=1 // pred_fallthru
      _
    // Predicated region
    $region78: #{tpu_custom_call.1} parent=1 // pred_check
      _
    $region79: #{tpu_custom_call.1} parent=1 // pred_check_branch
      %138 = sbr.rel (0) target = $region81
    $region80: #{tpu_custom_call.1} parent=1 // pred_region
      %139 = dma.done [#allocation13], 1024
    $region81: #{tpu_custom_call.1} parent=1 // pred_fallthru
      _
    %v141 = vld [vmem:[#allocation3] sm:$0xff]
    %v142 = vld [vmem:[#allocation3 + $0x8] sm:$0xff]
    %v143 = vld [vmem:[#allocation3 + $0x10] sm:$0xff]
    %v144 = vld [vmem:[#allocation3 + $0x18] sm:$0xff]
    %v145 = vld [vmem:[#allocation3 + $0x20] sm:$0xff]
    %v146 = vld [vmem:[#allocation3 + $0x28] sm:$0xff]
    %v147 = vld [vmem:[#allocation3 + $0x30] sm:$0xff]
    %v148 = vld [vmem:[#allocation3 + $0x38] sm:$0xff]
    %v149 = vld [vmem:[#allocation6] sm:$0xf]
    %v150 = vld [vmem:[#allocation6 + $0x4] sm:$0xf]
    %v151 = vld [vmem:[#allocation6 + $0x8] sm:$0xf]
    %v152 = vld [vmem:[#allocation6 + $0xc] sm:$0xf]
    %v153 = vld [vmem:[#allocation6 + $0x10] sm:$0xf]
    %v154 = vld [vmem:[#allocation6 + $0x14] sm:$0xf]
    %v155 = vld [vmem:[#allocation6 + $0x18] sm:$0xf]
    %v156 = vld [vmem:[#allocation6 + $0x1c] sm:$0xf]
    %v157 = vld [vmem:[#allocation6 + $0x20] sm:$0xf]
    %v158 = vld [vmem:[#allocation6 + $0x24] sm:$0xf]
    %v159 = vld [vmem:[#allocation6 + $0x28] sm:$0xf]
    %v160 = vld [vmem:[#allocation6 + $0x2c] sm:$0xf]
    %v161 = vld [vmem:[#allocation6 + $0x30] sm:$0xf]
    %v162 = vld [vmem:[#allocation6 + $0x34] sm:$0xf]
    %v163 = vld [vmem:[#allocation6 + $0x38] sm:$0xf]
    %v164 = vld [vmem:[#allocation6 + $0x3c] sm:$0xf]
    %v165 = vpack.c.bf16 %v141, %v141
    %v166 = vpack.c.bf16 %v142, %v142
    %v167 = vpack.c.bf16 %v143, %v143
    %v168 = vpack.c.bf16 %v144, %v144
    %v169 = vpack.c.bf16 %v145, %v145
    %v170 = vpack.c.bf16 %v146, %v146
    %v171 = vpack.c.bf16 %v147, %v147
    %v172 = vpack.c.bf16 %v148, %v148
    %v173 = vld [vmem:[%s2] sm:$0x1]
    %v175 = vlaneseq
    %v176 = vshrl.u32 %v175, 7
    %v177 = vsub.s32 0, %v176
    %v178 = vrot.slane %v173, %v177
    %v188 = vunpack.c.l.b16 %v165
    %v189 = vunpack.c.l.b16 %v166
    %v190 = vunpack.c.l.b16 %v167
    %v191 = vunpack.c.l.b16 %v168
    %v192 = vunpack.c.l.b16 %v169
    %v193 = vunpack.c.l.b16 %v170
    %v194 = vunpack.c.l.b16 %v171
    %v195 = vunpack.c.l.b16 %v172
    %v196 = vrot.slane %v189, 7
    %vm197 = vcmask 1041409
    %v198 = vsel %vm197, %v196, %v188
    %v199 = vrot.slane %v190, 6
    %vm200 = vcmask 1042434
    %v201 = vsel %vm200, %v199, %v198
    %v202 = vrot.slane %v191, 5
    %vm203 = vcmask 1043459
    %v204 = vsel %vm203, %v202, %v201
    %v205 = vrot.slane %v192, 4
    %vm206 = vcmask 1044484
    %v207 = vsel %vm206, %v205, %v204
    %v208 = vrot.slane %v193, 3
    %vm209 = vcmask 1045509
    %v210 = vsel %vm209, %v208, %v207
    %v211 = vrot.slane %v194, 2
    %vm212 = vcmask 1046534
    %v213 = vsel %vm212, %v211, %v210
    %v214 = vrot.slane %v195, 1
    %vm215 = vcmask 1047559
    %v216 = vsel %vm215, %v214, %v213
    %v217 = vpack.c.b16 %v216, %v216
    %v235 = vunpack.c.l.b16 %v149
    %v236 = vunpack.c.l.b16 %v150
    %v237 = vunpack.c.l.b16 %v151
    %v238 = vunpack.c.l.b16 %v152
    %v239 = vunpack.c.l.b16 %v153
    %v240 = vunpack.c.l.b16 %v154
    %v241 = vunpack.c.l.b16 %v155
    %v242 = vunpack.c.l.b16 %v156
    %v243 = vunpack.c.l.b16 %v157
    %v244 = vunpack.c.l.b16 %v158
    %v245 = vunpack.c.l.b16 %v159
    %v246 = vunpack.c.l.b16 %v160
    %v247 = vunpack.c.l.b16 %v161
    %v248 = vunpack.c.l.b16 %v162
    %v249 = vunpack.c.l.b16 %v163
    %v250 = vunpack.c.l.b16 %v164
    %v251 = vpack.c.b16 %v236, %v235
    %v252 = vpack.c.b16 %v238, %v237
    %v253 = vpack.c.b16 %v240, %v239
    %v254 = vpack.c.b16 %v242, %v241
    %v255 = vpack.c.b16 %v244, %v243
    %v256 = vpack.c.b16 %v246, %v245
    %v257 = vpack.c.b16 %v248, %v247
    %v258 = vpack.c.b16 %v250, %v249
    %267 = vmatprep.subr.bf16.mxu0 0
    %268 = vmatpush1.bf16.msra.mxu0 %v251
    %269 = vmatprep.subr.bf16.mxu0 0
    %270 = vmatpush1.bf16.msra.mxu0 %v252
    %271 = vmatprep.subr.bf16.mxu0 0
    %272 = vmatpush1.bf16.msra.mxu0 %v253
    %273 = vmatprep.subr.bf16.mxu0 0
    %274 = vmatpush1.bf16.msra.mxu0 %v254
    %275 = vmatprep.subr.bf16.mxu0 0
    %276 = vmatpush1.bf16.msra.mxu0 %v255
    %277 = vmatprep.subr.bf16.mxu0 0
    %278 = vmatpush1.bf16.msra.mxu0 %v256
    %279 = vmatprep.subr.bf16.mxu0 0
    %280 = vmatpush1.bf16.msra.mxu0 %v257
    %281 = vmatprep.subr.bf16.mxu0 0
    %282 = vmatpush1.bf16.msra.mxu0 %v258
    %283 = vmatprep.subr.bf16.mxu0 0
    %284 = vmatpush1.bf16.msra.mxu0 0
    %285 = vmatprep.subr.bf16.mxu0 0
    %286 = vmatpush1.bf16.msra.mxu0 0
    %287 = vmatprep.subr.bf16.mxu0 0
    %288 = vmatpush1.bf16.msra.mxu0 0
    %289 = vmatprep.subr.bf16.mxu0 0
    %290 = vmatpush1.bf16.msra.mxu0 0
    %291 = vmatprep.subr.bf16.mxu0 0
    %292 = vmatpush1.bf16.msra.mxu0 0
    %293 = vmatprep.subr.bf16.mxu0 0
    %294 = vmatpush1.bf16.msra.mxu0 0
    %295 = vmatprep.subr.bf16.mxu0 0
    %296 = vmatpush1.bf16.msra.mxu0 0
    %297 = vmatprep.subr.bf16.mxu0 0
    %298 = vmatpush1.bf16.msra.mxu0 0
    %299 = vmatprep.mubr.bf16.mxu0 0
    %300 = vmatmul.mubr.bf16.gmra.mrb[0].mxu0 %v217
    %v301 = vpop.f32.mrb[0].mxu0
    %v302 = vadd.f32 %v178, %v301
    %v303 = vpop.f32.mrb[0].mxu0
    %v304 = vpop.f32.mrb[0].mxu0
    %v305 = vpop.f32.mrb[0].mxu0
    %306 = vdwg.mxu0
    %v307 = vld [vmem:[#allocation8] sm:$0xf]
    %v308 = vld [vmem:[#allocation8 + $0x4] sm:$0xf]
    %v309 = vld [vmem:[#allocation8 + $0x8] sm:$0xf]
    %v310 = vld [vmem:[#allocation8 + $0xc] sm:$0xf]
    %v311 = vld [vmem:[#allocation8 + $0x10] sm:$0xf]
    %v312 = vld [vmem:[#allocation8 + $0x14] sm:$0xf]
    %v313 = vld [vmem:[#allocation8 + $0x18] sm:$0xf]
    %v314 = vld [vmem:[#allocation8 + $0x1c] sm:$0xf]
    %v315 = vld [vmem:[#allocation8 + $0x20] sm:$0xf]
    %v316 = vld [vmem:[#allocation8 + $0x24] sm:$0xf]
    %v317 = vld [vmem:[#allocation8 + $0x28] sm:$0xf]
    %v318 = vld [vmem:[#allocation8 + $0x2c] sm:$0xf]
    %v319 = vld [vmem:[#allocation8 + $0x30] sm:$0xf]
    %v320 = vld [vmem:[#allocation8 + $0x34] sm:$0xf]
    %v321 = vld [vmem:[#allocation8 + $0x38] sm:$0xf]
    %v322 = vld [vmem:[#allocation8 + $0x3c] sm:$0xf]
    %v323 = vld [vmem:[%s4] sm:$0x1]
    %v325 = vlaneseq
    %v326 = vshrl.u32 %v325, 7
    %v327 = vsub.s32 0, %v326
    %v328 = vrot.slane %v323, %v327
    %v346 = vunpack.c.l.b16 %v307
    %v347 = vunpack.c.l.b16 %v308
    %v348 = vunpack.c.l.b16 %v309
    %v349 = vunpack.c.l.b16 %v310
    %v350 = vunpack.c.l.b16 %v311
    %v351 = vunpack.c.l.b16 %v312
    %v352 = vunpack.c.l.b16 %v313
    %v353 = vunpack.c.l.b16 %v314
    %v354 = vunpack.c.l.b16 %v315
    %v355 = vunpack.c.l.b16 %v316
    %v356 = vunpack.c.l.b16 %v317
    %v357 = vunpack.c.l.b16 %v318
    %v358 = vunpack.c.l.b16 %v319
    %v359 = vunpack.c.l.b16 %v320
    %v360 = vunpack.c.l.b16 %v321
    %v361 = vunpack.c.l.b16 %v322
    %v362 = vpack.c.b16 %v347, %v346
    %v363 = vpack.c.b16 %v349, %v348
    %v364 = vpack.c.b16 %v351, %v350
    %v365 = vpack.c.b16 %v353, %v352
    %v366 = vpack.c.b16 %v355, %v354
    %v367 = vpack.c.b16 %v357, %v356
    %v368 = vpack.c.b16 %v359, %v358
    %v369 = vpack.c.b16 %v361, %v360
    %378 = vmatprep.subr.bf16.mxu0 0
    %379 = vmatpush1.bf16.msra.mxu0 %v362
    %380 = vmatprep.subr.bf16.mxu0 0
    %381 = vmatpush1.bf16.msra.mxu0 %v363
    %382 = vmatprep.subr.bf16.mxu0 0
    %383 = vmatpush1.bf16.msra.mxu0 %v364
    %384 = vmatprep.subr.bf16.mxu0 0
    %385 = vmatpush1.bf16.msra.mxu0 %v365
    %386 = vmatprep.subr.bf16.mxu0 0
    %387 = vmatpush1.bf16.msra.mxu0 %v366
    %388 = vmatprep.subr.bf16.mxu0 0
    %389 = vmatpush1.bf16.msra.mxu0 %v367
    %390 = vmatprep.subr.bf16.mxu0 0
    %391 = vmatpush1.bf16.msra.mxu0 %v368
    %392 = vmatprep.subr.bf16.mxu0 0
    %393 = vmatpush1.bf16.msra.mxu0 %v369
    %394 = vmatprep.subr.bf16.mxu0 0
    %395 = vmatpush1.bf16.msra.mxu0 0
    %396 = vmatprep.subr.bf16.mxu0 0
    %397 = vmatpush1.bf16.msra.mxu0 0
    %398 = vmatprep.subr.bf16.mxu0 0
    %399 = vmatpush1.bf16.msra.mxu0 0
    %400 = vmatprep.subr.bf16.mxu0 0
    %401 = vmatpush1.bf16.msra.mxu0 0
    %402 = vmatprep.subr.bf16.mxu0 0
    %403 = vmatpush1.bf16.msra.mxu0 0
    %404 = vmatprep.subr.bf16.mxu0 0
    %405 = vmatpush1.bf16.msra.mxu0 0
    %406 = vmatprep.subr.bf16.mxu0 0
    %407 = vmatpush1.bf16.msra.mxu0 0
    %408 = vmatprep.subr.bf16.mxu0 0
    %409 = vmatpush1.bf16.msra.mxu0 0
    %410 = vmatprep.mubr.bf16.mxu0 0
    %411 = vmatmul.mubr.bf16.gmra.mrb[0].mxu0 %v217
    %v412 = vpop.f32.mrb[0].mxu0
    %v413 = vadd.f32 %v328, %v412
    %v414 = vpop.f32.mrb[0].mxu0
    %v415 = vpop.f32.mrb[0].mxu0
    %v416 = vpop.f32.mrb[0].mxu0
    %417 = vdwg.mxu0
    %v418 = vld [vmem:[#allocation9] sm:$0xf]
    %v419 = vld [vmem:[#allocation9 + $0x4] sm:$0xf]
    %v420 = vld [vmem:[#allocation9 + $0x8] sm:$0xf]
    %v421 = vld [vmem:[#allocation9 + $0xc] sm:$0xf]
    %v422 = vld [vmem:[#allocation9 + $0x10] sm:$0xf]
    %v423 = vld [vmem:[#allocation9 + $0x14] sm:$0xf]
    %v424 = vld [vmem:[#allocation9 + $0x18] sm:$0xf]
    %v425 = vld [vmem:[#allocation9 + $0x1c] sm:$0xf]
    %v426 = vld [vmem:[#allocation9 + $0x20] sm:$0xf]
    %v427 = vld [vmem:[#allocation9 + $0x24] sm:$0xf]
    %v428 = vld [vmem:[#allocation9 + $0x28] sm:$0xf]
    %v429 = vld [vmem:[#allocation9 + $0x2c] sm:$0xf]
    %v430 = vld [vmem:[#allocation9 + $0x30] sm:$0xf]
    %v431 = vld [vmem:[#allocation9 + $0x34] sm:$0xf]
    %v432 = vld [vmem:[#allocation9 + $0x38] sm:$0xf]
    %v433 = vld [vmem:[#allocation9 + $0x3c] sm:$0xf]
    %v434 = vld [vmem:[%s6] sm:$0x1]
    %v436 = vlaneseq
    %v437 = vshrl.u32 %v436, 7
    %v438 = vsub.s32 0, %v437
    %v439 = vrot.slane %v434, %v438
    %v457 = vunpack.c.l.b16 %v418
    %v458 = vunpack.c.l.b16 %v419
    %v459 = vunpack.c.l.b16 %v420
    %v460 = vunpack.c.l.b16 %v421
    %v461 = vunpack.c.l.b16 %v422
    %v462 = vunpack.c.l.b16 %v423
    %v463 = vunpack.c.l.b16 %v424
    %v464 = vunpack.c.l.b16 %v425
    %v465 = vunpack.c.l.b16 %v426
    %v466 = vunpack.c.l.b16 %v427
    %v467 = vunpack.c.l.b16 %v428
    %v468 = vunpack.c.l.b16 %v429
    %v469 = vunpack.c.l.b16 %v430
    %v470 = vunpack.c.l.b16 %v431
    %v471 = vunpack.c.l.b16 %v432
    %v472 = vunpack.c.l.b16 %v433
    %v473 = vpack.c.b16 %v458, %v457
    %v474 = vpack.c.b16 %v460, %v459
    %v475 = vpack.c.b16 %v462, %v461
    %v476 = vpack.c.b16 %v464, %v463
    %v477 = vpack.c.b16 %v466, %v465
    %v478 = vpack.c.b16 %v468, %v467
    %v479 = vpack.c.b16 %v470, %v469
    %v480 = vpack.c.b16 %v472, %v471
    %489 = vmatprep.subr.bf16.mxu0 0
    %490 = vmatpush1.bf16.msra.mxu0 %v473
    %491 = vmatprep.subr.bf16.mxu0 0
    %492 = vmatpush1.bf16.msra.mxu0 %v474
    %493 = vmatprep.subr.bf16.mxu0 0
    %494 = vmatpush1.bf16.msra.mxu0 %v475
    %495 = vmatprep.subr.bf16.mxu0 0
    %496 = vmatpush1.bf16.msra.mxu0 %v476
    %497 = vmatprep.subr.bf16.mxu0 0
    %498 = vmatpush1.bf16.msra.mxu0 %v477
    %499 = vmatprep.subr.bf16.mxu0 0
    %500 = vmatpush1.bf16.msra.mxu0 %v478
    %501 = vmatprep.subr.bf16.mxu0 0
    %502 = vmatpush1.bf16.msra.mxu0 %v479
    %503 = vmatprep.subr.bf16.mxu0 0
    %504 = vmatpush1.bf16.msra.mxu0 %v480
    %505 = vmatprep.subr.bf16.mxu0 0
    %506 = vmatpush1.bf16.msra.mxu0 0
    %507 = vmatprep.subr.bf16.mxu0 0
    %508 = vmatpush1.bf16.msra.mxu0 0
    %509 = vmatprep.subr.bf16.mxu0 0
    %510 = vmatpush1.bf16.msra.mxu0 0
    %511 = vmatprep.subr.bf16.mxu0 0
    %512 = vmatpush1.bf16.msra.mxu0 0
    %513 = vmatprep.subr.bf16.mxu0 0
    %514 = vmatpush1.bf16.msra.mxu0 0
    %515 = vmatprep.subr.bf16.mxu0 0
    %516 = vmatpush1.bf16.msra.mxu0 0
    %517 = vmatprep.subr.bf16.mxu0 0
    %518 = vmatpush1.bf16.msra.mxu0 0
    %519 = vmatprep.subr.bf16.mxu0 0
    %520 = vmatpush1.bf16.msra.mxu0 0
    %521 = vmatprep.mubr.bf16.mxu0 0
    %522 = vmatmul.mubr.bf16.gmra.mrb[0].mxu0 %v217
    %v523 = vpop.f32.mrb[0].mxu0
    %v524 = vadd.f32 %v439, %v523
    %v525 = vpop.f32.mrb[0].mxu0
    %v526 = vpop.f32.mrb[0].mxu0
    %v527 = vpop.f32.mrb[0].mxu0
    %528 = vdwg.mxu0
    %v529 = vpack.c.bf16 %v302, %v302
    %v530 = vpack.c.bf16 %v413, %v413
    %vm531 = vcmask 261120
    %v533 = vsel %vm531, %v529, 0
    %v536 = vsel %vm531, %v530, 0
    %538 = vmatprep.subr.bf16.mxu0 0
    %539 = vmatpush1.bf16.xpose.msra.mxu0 %v536
    %540 = vmatprep.subr.bf16.mxu0 0
    %541 = vmatpush1.bf16.xpose.msra.mxu0 0
    %542 = vmatprep.subr.bf16.mxu0 0
    %543 = vmatpush1.bf16.xpose.msra.mxu0 0
    %544 = vmatprep.subr.bf16.mxu0 0
    %545 = vmatpush1.bf16.xpose.msra.mxu0 0
    %546 = vmatprep.subr.bf16.mxu0 0
    %547 = vmatpush1.bf16.xpose.msra.mxu0 0
    %548 = vmatprep.subr.bf16.mxu0 0
    %549 = vmatpush1.bf16.xpose.msra.mxu0 0
    %550 = vmatprep.subr.bf16.mxu0 0
    %551 = vmatpush1.bf16.xpose.msra.mxu0 0
    %552 = vmatprep.subr.bf16.mxu0 0
    %553 = vmatpush1.bf16.xpose.msra.mxu0 0
    %554 = vmatprep.subr.bf16.mxu0 0
    %555 = vmatpush1.bf16.xpose.msra.mxu0 0
    %556 = vmatprep.subr.bf16.mxu0 0
    %557 = vmatpush1.bf16.xpose.msra.mxu0 0
    %558 = vmatprep.subr.bf16.mxu0 0
    %559 = vmatpush1.bf16.xpose.msra.mxu0 0
    %560 = vmatprep.subr.bf16.mxu0 0
    %561 = vmatpush1.bf16.xpose.msra.mxu0 0
    %562 = vmatprep.subr.bf16.mxu0 0
    %563 = vmatpush1.bf16.xpose.msra.mxu0 0
    %564 = vmatprep.subr.bf16.mxu0 0
    %565 = vmatpush1.bf16.xpose.msra.mxu0 0
    %566 = vmatprep.subr.bf16.mxu0 0
    %567 = vmatpush1.bf16.xpose.msra.mxu0 0
    %568 = vmatprep.subr.bf16.mxu0 0
    %569 = vmatpush1.bf16.xpose.msra.mxu0 0
    %570 = vmatprep.mubr.bf16.mxu0 0
    %571 = vmatmul.mubr.bf16.gmra.mrb[0].mxu0 %v533
    %v572 = vpop.f32.mrb[0].mxu0
    %v573 = vadd.f32 0.0, %v572
    %v574 = vpop.f32.mrb[0].mxu0
    %v575 = vpop.f32.mrb[0].mxu0
    %v576 = vpop.f32.mrb[0].mxu0
    %577 = vdwg.mxu0
    %vm578 = vcmask 64512
    %v579 = vsel %vm578, %v573, -inf
    %580 = vmax.xlane.f32.xlu0 %v579
    %v581 = vpop.xlane.xlu0 %580
    %v582 = vsub.f32 %v573, %v581
    %v583 = vmul.f32 %v582, 1.442695
    %v584 = vpow.pop %v583
    %v585 = vsel %vm578, %v584, 0.0
    %586 = vadd.xlane.f32.xlu0 %v585
    %v587 = vpop.xlane.xlu0 %586
    %v588 = vrcp.pop %v587
    %v589 = vmul.f32 %v584, %v588
    %v590 = vpack.c.bf16 %v589, %v589
    %v592 = vsel %vm578, %v590, 0
    %594 = vmatprep.subr.mxu0 0.0
    %595 = vmatpush1.msra.mxu0 %v524
    %596 = vmatprep.subr.mxu0 0.0
    %597 = vmatpush1.msra.mxu0 0.0
    %598 = vmatprep.subr.mxu0 0.0
    %599 = vmatpush1.msra.mxu0 0.0
    %600 = vmatprep.subr.mxu0 0.0
    %601 = vmatpush1.msra.mxu0 0.0
    %602 = vmatprep.subr.mxu0 0.0
    %603 = vmatpush1.msra.mxu0 0.0
    %604 = vmatprep.subr.mxu0 0.0
    %605 = vmatpush1.msra.mxu0 0.0
    %606 = vmatprep.subr.mxu0 0.0
    %607 = vmatpush1.msra.mxu0 0.0
    %608 = vmatprep.subr.mxu0 0.0
    %609 = vmatpush1.msra.mxu0 0.0
    %610 = vmatprep.subr.mxu0 0.0
    %611 = vmatpush1.msra.mxu0 0.0
    %612 = vmatprep.subr.mxu0 0.0
    %613 = vmatpush1.msra.mxu0 0.0
    %614 = vmatprep.subr.mxu0 0.0
    %615 = vmatpush1.msra.mxu0 0.0
    %616 = vmatprep.subr.mxu0 0.0
    %617 = vmatpush1.msra.mxu0 0.0
    %618 = vmatprep.subr.mxu0 0.0
    %619 = vmatpush1.msra.mxu0 0.0
    %620 = vmatprep.subr.mxu0 0.0
    %621 = vmatpush1.msra.mxu0 0.0
    %622 = vmatprep.subr.mxu0 0.0
    %623 = vmatpush1.msra.mxu0 0.0
    %624 = vmatprep.subr.mxu0 0.0
    %625 = vmatpush1.msra.mxu0 0.0
    %626 = vmatprep.subr.mxu0 0.0
    %627 = vmatpush1.msra.mxu0 0.0
    %628 = vmatprep.subr.mxu0 0.0
    %629 = vmatpush1.msra.mxu0 0.0
    %630 = vmatprep.subr.mxu0 0.0
    %631 = vmatpush1.msra.mxu0 0.0
    %632 = vmatprep.subr.mxu0 0.0
    %633 = vmatpush1.msra.mxu0 0.0
    %634 = vmatprep.subr.mxu0 0.0
    %635 = vmatpush1.msra.mxu0 0.0
    %636 = vmatprep.subr.mxu0 0.0
    %637 = vmatpush1.msra.mxu0 0.0
    %638 = vmatprep.subr.mxu0 0.0
    %639 = vmatpush1.msra.mxu0 0.0
    %640 = vmatprep.subr.mxu0 0.0
    %641 = vmatpush1.msra.mxu0 0.0
    %642 = vmatprep.subr.mxu0 0.0
    %643 = vmatpush1.msra.mxu0 0.0
    %644 = vmatprep.subr.mxu0 0.0
    %645 = vmatpush1.msra.mxu0 0.0
    %646 = vmatprep.subr.mxu0 0.0
    %647 = vmatpush1.msra.mxu0 0.0
    %648 = vmatprep.subr.mxu0 0.0
    %649 = vmatpush1.msra.mxu0 0.0
    %650 = vmatprep.subr.mxu0 0.0
    %651 = vmatpush1.msra.mxu0 0.0
    %652 = vmatprep.subr.mxu0 0.0
    %653 = vmatpush1.msra.mxu0 0.0
    %654 = vmatprep.subr.mxu0 0.0
    %655 = vmatpush1.msra.mxu0 0.0
    %656 = vmatprep.subr.mxu0 0.0
    %657 = vmatpush1.msra.mxu0 0.0
    %658 = vmatprep.mubr.bf16.mxu0 0
    %659 = vmatmul.mubr.bf16.gmra.mrb[0].mxu0 %v592
    %v660 = vpop.f32.mrb[0].mxu0
    %v661 = vadd.f32 0.0, %v660
    %v662 = vpop.f32.mrb[0].mxu0
    %v663 = vpop.f32.mrb[0].mxu0
    %v664 = vpop.f32.mrb[0].mxu0
    %665 = vdwg.mxu0
    %666 = vst.msk [vmem:[#allocation2] sm:$0xff] %vm531, %v661
    %668 = vrot.lane.b32.xlu0 %v529, 96
    %v669 = vpop.permute.xlu0 %668
    %671 = vrot.lane.b32.xlu0 %v530, 96
    %v672 = vpop.permute.xlu0 %671
    %v674 = vsel %vm531, %v669, 0
    %v677 = vsel %vm531, %v672, 0
    %679 = vmatprep.subr.bf16.mxu0 0
    %680 = vmatpush1.bf16.xpose.msra.mxu0 %v677
    %681 = vmatprep.subr.bf16.mxu0 0
    %682 = vmatpush1.bf16.xpose.msra.mxu0 0
    %683 = vmatprep.subr.bf16.mxu0 0
    %684 = vmatpush1.bf16.xpose.msra.mxu0 0
    %685 = vmatprep.subr.bf16.mxu0 0
    %686 = vmatpush1.bf16.xpose.msra.mxu0 0
    %687 = vmatprep.subr.bf16.mxu0 0
    %688 = vmatpush1.bf16.xpose.msra.mxu0 0
    %689 = vmatprep.subr.bf16.mxu0 0
    %690 = vmatpush1.bf16.xpose.msra.mxu0 0
    %691 = vmatprep.subr.bf16.mxu0 0
    %692 = vmatpush1.bf16.xpose.msra.mxu0 0
    %693 = vmatprep.subr.bf16.mxu0 0
    %694 = vmatpush1.bf16.xpose.msra.mxu0 0
    %695 = vmatprep.subr.bf16.mxu0 0
    %696 = vmatpush1.bf16.xpose.msra.mxu0 0
    %697 = vmatprep.subr.bf16.mxu0 0
    %698 = vmatpush1.bf16.xpose.msra.mxu0 0
    %699 = vmatprep.subr.bf16.mxu0 0
    %700 = vmatpush1.bf16.xpose.msra.mxu0 0
    %701 = vmatprep.subr.bf16.mxu0 0
    %702 = vmatpush1.bf16.xpose.msra.mxu0 0
    %703 = vmatprep.subr.bf16.mxu0 0
    %704 = vmatpush1.bf16.xpose.msra.mxu0 0
    %705 = vmatprep.subr.bf16.mxu0 0
    %706 = vmatpush1.bf16.xpose.msra.mxu0 0
    %707 = vmatprep.subr.bf16.mxu0 0
    %708 = vmatpush1.bf16.xpose.msra.mxu0 0
    %709 = vmatprep.subr.bf16.mxu0 0
    %710 = vmatpush1.bf16.xpose.msra.mxu0 0
    %711 = vmatprep.mubr.bf16.mxu0 0
    %712 = vmatmul.mubr.bf16.gmra.mrb[0].mxu0 %v674
    %v713 = vpop.f32.mrb[0].mxu0
    %v714 = vadd.f32 0.0, %v713
    %v715 = vpop.f32.mrb[0].mxu0
    %v716 = vpop.f32.mrb[0].mxu0
    %v717 = vpop.f32.mrb[0].mxu0
    %718 = vdwg.mxu0
    %v719 = vsel %vm578, %v714, -inf
    %720 = vmax.xlane.f32.xlu0 %v719
    %v721 = vpop.xlane.xlu0 %720
    %v722 = vsub.f32 %v714, %v721
    %v723 = vmul.f32 %v722, 1.442695
    %v724 = vpow.pop %v723
    %v725 = vsel %vm578, %v724, 0.0
    %726 = vadd.xlane.f32.xlu0 %v725
    %v727 = vpop.xlane.xlu0 %726
    %v728 = vrcp.pop %v727
    %v729 = vmul.f32 %v724, %v728
    %v730 = vpack.c.bf16 %v729, %v729
    %732 = vrot.lane.b32.xlu0 %v524, 96
    %v733 = vpop.permute.xlu0 %732
    %v736 = vsel %vm578, %v730, 0
    %738 = vmatprep.subr.mxu0 0.0
    %739 = vmatpush1.msra.mxu0 %v733
    %740 = vmatprep.subr.mxu0 0.0
    %741 = vmatpush1.msra.mxu0 0.0
    %742 = vmatprep.subr.mxu0 0.0
    %743 = vmatpush1.msra.mxu0 0.0
    %744 = vmatprep.subr.mxu0 0.0
    %745 = vmatpush1.msra.mxu0 0.0
    %746 = vmatprep.subr.mxu0 0.0
    %747 = vmatpush1.msra.mxu0 0.0
    %748 = vmatprep.subr.mxu0 0.0
    %749 = vmatpush1.msra.mxu0 0.0
    %750 = vmatprep.subr.mxu0 0.0
    %751 = vmatpush1.msra.mxu0 0.0
    %752 = vmatprep.subr.mxu0 0.0
    %753 = vmatpush1.msra.mxu0 0.0
    %754 = vmatprep.subr.mxu0 0.0
    %755 = vmatpush1.msra.mxu0 0.0
    %756 = vmatprep.subr.mxu0 0.0
    %757 = vmatpush1.msra.mxu0 0.0
    %758 = vmatprep.subr.mxu0 0.0
    %759 = vmatpush1.msra.mxu0 0.0
    %760 = vmatprep.subr.mxu0 0.0
    %761 = vmatpush1.msra.mxu0 0.0
    %762 = vmatprep.subr.mxu0 0.0
    %763 = vmatpush1.msra.mxu0 0.0
    %764 = vmatprep.subr.mxu0 0.0
    %765 = vmatpush1.msra.mxu0 0.0
    %766 = vmatprep.subr.mxu0 0.0
    %767 = vmatpush1.msra.mxu0 0.0
    %768 = vmatprep.subr.mxu0 0.0
    %769 = vmatpush1.msra.mxu0 0.0
    %770 = vmatprep.subr.mxu0 0.0
    %771 = vmatpush1.msra.mxu0 0.0
    %772 = vmatprep.subr.mxu0 0.0
    %773 = vmatpush1.msra.mxu0 0.0
    %774 = vmatprep.subr.mxu0 0.0
    %775 = vmatpush1.msra.mxu0 0.0
    %776 = vmatprep.subr.mxu0 0.0
    %777 = vmatpush1.msra.mxu0 0.0
    %778 = vmatprep.subr.mxu0 0.0
    %779 = vmatpush1.msra.mxu0 0.0
    %780 = vmatprep.subr.mxu0 0.0
    %781 = vmatpush1.msra.mxu0 0.0
    %782 = vmatprep.subr.mxu0 0.0
    %783 = vmatpush1.msra.mxu0 0.0
    %784 = vmatprep.subr.mxu0 0.0
    %785 = vmatpush1.msra.mxu0 0.0
    %786 = vmatprep.subr.mxu0 0.0
    %787 = vmatpush1.msra.mxu0 0.0
    %788 = vmatprep.subr.mxu0 0.0
    %789 = vmatpush1.msra.mxu0 0.0
    %790 = vmatprep.subr.mxu0 0.0
    %791 = vmatpush1.msra.mxu0 0.0
    %792 = vmatprep.subr.mxu0 0.0
    %793 = vmatpush1.msra.mxu0 0.0
    %794 = vmatprep.subr.mxu0 0.0
    %795 = vmatpush1.msra.mxu0 0.0
    %796 = vmatprep.subr.mxu0 0.0
    %797 = vmatpush1.msra.mxu0 0.0
    %798 = vmatprep.subr.mxu0 0.0
    %799 = vmatpush1.msra.mxu0 0.0
    %800 = vmatprep.subr.mxu0 0.0
    %801 = vmatpush1.msra.mxu0 0.0
    %802 = vmatprep.mubr.bf16.mxu0 0
    %803 = vmatmul.mubr.bf16.gmra.mrb[0].mxu0 %v736
    %v804 = vpop.f32.mrb[0].mxu0
    %v805 = vadd.f32 0.0, %v804
    %v806 = vpop.f32.mrb[0].mxu0
    %v807 = vpop.f32.mrb[0].mxu0
    %v808 = vpop.f32.mrb[0].mxu0
    %809 = vdwg.mxu0
    %811 = vrot.lane.b32.xlu0 %v805, 32
    %v812 = vpop.permute.xlu0 %811
    %vm814 = vcmask 523520
    %815 = vst.msk [vmem:[#allocation2] sm:$0xff] %vm814, %v812
    %816 = vrot.lane.b32.xlu0 %v529, 64
    %v817 = vpop.permute.xlu0 %816
    %818 = vrot.lane.b32.xlu0 %v530, 64
    %v819 = vpop.permute.xlu0 %818
    %v821 = vsel %vm531, %v817, 0
    %v824 = vsel %vm531, %v819, 0
    %826 = vmatprep.subr.bf16.mxu0 0
    %827 = vmatpush1.bf16.xpose.msra.mxu0 %v824
    %828 = vmatprep.subr.bf16.mxu0 0
    %829 = vmatpush1.bf16.xpose.msra.mxu0 0
    %830 = vmatprep.subr.bf16.mxu0 0
    %831 = vmatpush1.bf16.xpose.msra.mxu0 0
    %832 = vmatprep.subr.bf16.mxu0 0
    %833 = vmatpush1.bf16.xpose.msra.mxu0 0
    %834 = vmatprep.subr.bf16.mxu0 0
    %835 = vmatpush1.bf16.xpose.msra.mxu0 0
    %836 = vmatprep.subr.bf16.mxu0 0
    %837 = vmatpush1.bf16.xpose.msra.mxu0 0
    %838 = vmatprep.subr.bf16.mxu0 0
    %839 = vmatpush1.bf16.xpose.msra.mxu0 0
    %840 = vmatprep.subr.bf16.mxu0 0
    %841 = vmatpush1.bf16.xpose.msra.mxu0 0
    %842 = vmatprep.subr.bf16.mxu0 0
    %843 = vmatpush1.bf16.xpose.msra.mxu0 0
    %844 = vmatprep.subr.bf16.mxu0 0
    %845 = vmatpush1.bf16.xpose.msra.mxu0 0
    %846 = vmatprep.subr.bf16.mxu0 0
    %847 = vmatpush1.bf16.xpose.msra.mxu0 0
    %848 = vmatprep.subr.bf16.mxu0 0
    %849 = vmatpush1.bf16.xpose.msra.mxu0 0
    %850 = vmatprep.subr.bf16.mxu0 0
    %851 = vmatpush1.bf16.xpose.msra.mxu0 0
    %852 = vmatprep.subr.bf16.mxu0 0
    %853 = vmatpush1.bf16.xpose.msra.mxu0 0
    %854 = vmatprep.subr.bf16.mxu0 0
    %855 = vmatpush1.bf16.xpose.msra.mxu0 0
    %856 = vmatprep.subr.bf16.mxu0 0
    %857 = vmatpush1.bf16.xpose.msra.mxu0 0
    %858 = vmatprep.mubr.bf16.mxu0 0
    %859 = vmatmul.mubr.bf16.gmra.mrb[0].mxu0 %v821
    %v860 = vpop.f32.mrb[0].mxu0
    %v861 = vadd.f32 0.0, %v860
    %v862 = vpop.f32.mrb[0].mxu0
    %v863 = vpop.f32.mrb[0].mxu0
    %v864 = vpop.f32.mrb[0].mxu0
    %865 = vdwg.mxu0
    %v866 = vsel %vm578, %v861, -inf
    %867 = vmax.xlane.f32.xlu0 %v866
    %v868 = vpop.xlane.xlu0 %867
    %v869 = vsub.f32 %v861, %v868
    %v870 = vmul.f32 %v869, 1.442695
    %v871 = vpow.pop %v870
    %v872 = vsel %vm578, %v871, 0.0
    %873 = vadd.xlane.f32.xlu0 %v872
    %v874 = vpop.xlane.xlu0 %873
    %v875 = vrcp.pop %v874
    %v876 = vmul.f32 %v871, %v875
    %v877 = vpack.c.bf16 %v876, %v876
    %878 = vrot.lane.b32.xlu0 %v524, 64
    %v879 = vpop.permute.xlu0 %878
    %v882 = vsel %vm578, %v877, 0
    %884 = vmatprep.subr.mxu0 0.0
    %885 = vmatpush1.msra.mxu0 %v879
    %886 = vmatprep.subr.mxu0 0.0
    %887 = vmatpush1.msra.mxu0 0.0
    %888 = vmatprep.subr.mxu0 0.0
    %889 = vmatpush1.msra.mxu0 0.0
    %890 = vmatprep.subr.mxu0 0.0
    %891 = vmatpush1.msra.mxu0 0.0
    %892 = vmatprep.subr.mxu0 0.0
    %893 = vmatpush1.msra.mxu0 0.0
    %894 = vmatprep.subr.mxu0 0.0
    %895 = vmatpush1.msra.mxu0 0.0
    %896 = vmatprep.subr.mxu0 0.0
    %897 = vmatpush1.msra.mxu0 0.0
    %898 = vmatprep.subr.mxu0 0.0
    %899 = vmatpush1.msra.mxu0 0.0
    %900 = vmatprep.subr.mxu0 0.0
    %901 = vmatpush1.msra.mxu0 0.0
    %902 = vmatprep.subr.mxu0 0.0
    %903 = vmatpush1.msra.mxu0 0.0
    %904 = vmatprep.subr.mxu0 0.0
    %905 = vmatpush1.msra.mxu0 0.0
    %906 = vmatprep.subr.mxu0 0.0
    %907 = vmatpush1.msra.mxu0 0.0
    %908 = vmatprep.subr.mxu0 0.0
    %909 = vmatpush1.msra.mxu0 0.0
    %910 = vmatprep.subr.mxu0 0.0
    %911 = vmatpush1.msra.mxu0 0.0
    %912 = vmatprep.subr.mxu0 0.0
    %913 = vmatpush1.msra.mxu0 0.0
    %914 = vmatprep.subr.mxu0 0.0
    %915 = vmatpush1.msra.mxu0 0.0
    %916 = vmatprep.subr.mxu0 0.0
    %917 = vmatpush1.msra.mxu0 0.0
    %918 = vmatprep.subr.mxu0 0.0
    %919 = vmatpush1.msra.mxu0 0.0
    %920 = vmatprep.subr.mxu0 0.0
    %921 = vmatpush1.msra.mxu0 0.0
    %922 = vmatprep.subr.mxu0 0.0
    %923 = vmatpush1.msra.mxu0 0.0
    %924 = vmatprep.subr.mxu0 0.0
    %925 = vmatpush1.msra.mxu0 0.0
    %926 = vmatprep.subr.mxu0 0.0
    %927 = vmatpush1.msra.mxu0 0.0
    %928 = vmatprep.subr.mxu0 0.0
    %929 = vmatpush1.msra.mxu0 0.0
    %930 = vmatprep.subr.mxu0 0.0
    %931 = vmatpush1.msra.mxu0 0.0
    %932 = vmatprep.subr.mxu0 0.0
    %933 = vmatpush1.msra.mxu0 0.0
    %934 = vmatprep.subr.mxu0 0.0
    %935 = vmatpush1.msra.mxu0 0.0
    %936 = vmatprep.subr.mxu0 0.0
    %937 = vmatpush1.msra.mxu0 0.0
    %938 = vmatprep.subr.mxu0 0.0
    %939 = vmatpush1.msra.mxu0 0.0
    %940 = vmatprep.subr.mxu0 0.0
    %941 = vmatpush1.msra.mxu0 0.0
    %942 = vmatprep.subr.mxu0 0.0
    %943 = vmatpush1.msra.mxu0 0.0
    %944 = vmatprep.subr.mxu0 0.0
    %945 = vmatpush1.msra.mxu0 0.0
    %946 = vmatprep.subr.mxu0 0.0
    %947 = vmatpush1.msra.mxu0 0.0
    %948 = vmatprep.mubr.bf16.mxu0 0
    %949 = vmatmul.mubr.bf16.gmra.mrb[0].mxu0 %v882
    %v950 = vpop.f32.mrb[0].mxu0
    %v951 = vadd.f32 0.0, %v950
    %v952 = vpop.f32.mrb[0].mxu0
    %v953 = vpop.f32.mrb[0].mxu0
    %v954 = vpop.f32.mrb[0].mxu0
    %955 = vdwg.mxu0
    %957 = vrot.lane.b32.xlu0 %v951, 64
    %v958 = vpop.permute.xlu0 %957
    %vm960 = vcmask 785920
    %961 = vst.msk [vmem:[#allocation2] sm:$0xff] %vm960, %v958
    %962 = vrot.lane.b32.xlu0 %v529, 32
    %v963 = vpop.permute.xlu0 %962
    %964 = vrot.lane.b32.xlu0 %v530, 32
    %v965 = vpop.permute.xlu0 %964
    %v967 = vsel %vm531, %v963, 0
    %v970 = vsel %vm531, %v965, 0
    %972 = vmatprep.subr.bf16.mxu0 0
    %973 = vmatpush1.bf16.xpose.msra.mxu0 %v970
    %974 = vmatprep.subr.bf16.mxu0 0
    %975 = vmatpush1.bf16.xpose.msra.mxu0 0
    %976 = vmatprep.subr.bf16.mxu0 0
    %977 = vmatpush1.bf16.xpose.msra.mxu0 0
    %978 = vmatprep.subr.bf16.mxu0 0
    %979 = vmatpush1.bf16.xpose.msra.mxu0 0
    %980 = vmatprep.subr.bf16.mxu0 0
    %981 = vmatpush1.bf16.xpose.msra.mxu0 0
    %982 = vmatprep.subr.bf16.mxu0 0
    %983 = vmatpush1.bf16.xpose.msra.mxu0 0
    %984 = vmatprep.subr.bf16.mxu0 0
    %985 = vmatpush1.bf16.xpose.msra.mxu0 0
    %986 = vmatprep.subr.bf16.mxu0 0
    %987 = vmatpush1.bf16.xpose.msra.mxu0 0
    %988 = vmatprep.subr.bf16.mxu0 0
    %989 = vmatpush1.bf16.xpose.msra.mxu0 0
    %990 = vmatprep.subr.bf16.mxu0 0
    %991 = vmatpush1.bf16.xpose.msra.mxu0 0
    %992 = vmatprep.subr.bf16.mxu0 0
    %993 = vmatpush1.bf16.xpose.msra.mxu0 0
    %994 = vmatprep.subr.bf16.mxu0 0
    %995 = vmatpush1.bf16.xpose.msra.mxu0 0
    %996 = vmatprep.subr.bf16.mxu0 0
    %997 = vmatpush1.bf16.xpose.msra.mxu0 0
    %998 = vmatprep.subr.bf16.mxu0 0
    %999 = vmatpush1.bf16.xpose.msra.mxu0 0
    %1000 = vmatprep.subr.bf16.mxu0 0
    %1001 = vmatpush1.bf16.xpose.msra.mxu0 0
    %1002 = vmatprep.subr.bf16.mxu0 0
    %1003 = vmatpush1.bf16.xpose.msra.mxu0 0
    %1004 = vmatprep.mubr.bf16.mxu0 0
    %1005 = vmatmul.mubr.bf16.gmra.mrb[0].mxu0 %v967
    %v1006 = vpop.f32.mrb[0].mxu0
    %v1007 = vadd.f32 0.0, %v1006
    %v1008 = vpop.f32.mrb[0].mxu0
    %v1009 = vpop.f32.mrb[0].mxu0
    %v1010 = vpop.f32.mrb[0].mxu0
    %1011 = vdwg.mxu0
    %v1012 = vsel %vm578, %v1007, -inf
    %1013 = vmax.xlane.f32.xlu0 %v1012
    %v1014 = vpop.xlane.xlu0 %1013
    %v1015 = vsub.f32 %v1007, %v1014
    %v1016 = vmul.f32 %v1015, 1.442695
    %v1017 = vpow.pop %v1016
    %v1018 = vsel %vm578, %v1017, 0.0
    %1019 = vadd.xlane.f32.xlu0 %v1018
    %v1020 = vpop.xlane.xlu0 %1019
    %v1021 = vrcp.pop %v1020
    %v1022 = vmul.f32 %v1017, %v1021
    %v1023 = vpack.c.bf16 %v1022, %v1022
    %1024 = vrot.lane.b32.xlu0 %v524, 32
    %v1025 = vpop.permute.xlu0 %1024
    %v1028 = vsel %vm578, %v1023, 0
    %1030 = vmatprep.subr.mxu0 0.0
    %1031 = vmatpush1.msra.mxu0 %v1025
    %1032 = vmatprep.subr.mxu0 0.0
    %1033 = vmatpush1.msra.mxu0 0.0
    %1034 = vmatprep.subr.mxu0 0.0
    %1035 = vmatpush1.msra.mxu0 0.0
    %1036 = vmatprep.subr.mxu0 0.0
    %1037 = vmatpush1.msra.mxu0 0.0
    %1038 = vmatprep.subr.mxu0 0.0
    %1039 = vmatpush1.msra.mxu0 0.0
    %1040 = vmatprep.subr.mxu0 0.0
    %1041 = vmatpush1.msra.mxu0 0.0
    %1042 = vmatprep.subr.mxu0 0.0
    %1043 = vmatpush1.msra.mxu0 0.0
    %1044 = vmatprep.subr.mxu0 0.0
    %1045 = vmatpush1.msra.mxu0 0.0
    %1046 = vmatprep.subr.mxu0 0.0
    %1047 = vmatpush1.msra.mxu0 0.0
    %1048 = vmatprep.subr.mxu0 0.0
    %1049 = vmatpush1.msra.mxu0 0.0
    %1050 = vmatprep.subr.mxu0 0.0
    %1051 = vmatpush1.msra.mxu0 0.0
    %1052 = vmatprep.subr.mxu0 0.0
    %1053 = vmatpush1.msra.mxu0 0.0
    %1054 = vmatprep.subr.mxu0 0.0
    %1055 = vmatpush1.msra.mxu0 0.0
    %1056 = vmatprep.subr.mxu0 0.0
    %1057 = vmatpush1.msra.mxu0 0.0
    %1058 = vmatprep.subr.mxu0 0.0
    %1059 = vmatpush1.msra.mxu0 0.0
    %1060 = vmatprep.subr.mxu0 0.0
    %1061 = vmatpush1.msra.mxu0 0.0
    %1062 = vmatprep.subr.mxu0 0.0
    %1063 = vmatpush1.msra.mxu0 0.0
    %1064 = vmatprep.subr.mxu0 0.0
    %1065 = vmatpush1.msra.mxu0 0.0
    %1066 = vmatprep.subr.mxu0 0.0
    %1067 = vmatpush1.msra.mxu0 0.0
    %1068 = vmatprep.subr.mxu0 0.0
    %1069 = vmatpush1.msra.mxu0 0.0
    %1070 = vmatprep.subr.mxu0 0.0
    %1071 = vmatpush1.msra.mxu0 0.0
    %1072 = vmatprep.subr.mxu0 0.0
    %1073 = vmatpush1.msra.mxu0 0.0
    %1074 = vmatprep.subr.mxu0 0.0
    %1075 = vmatpush1.msra.mxu0 0.0
    %1076 = vmatprep.subr.mxu0 0.0
    %1077 = vmatpush1.msra.mxu0 0.0
    %1078 = vmatprep.subr.mxu0 0.0
    %1079 = vmatpush1.msra.mxu0 0.0
    %1080 = vmatprep.subr.mxu0 0.0
    %1081 = vmatpush1.msra.mxu0 0.0
    %1082 = vmatprep.subr.mxu0 0.0
    %1083 = vmatpush1.msra.mxu0 0.0
    %1084 = vmatprep.subr.mxu0 0.0
    %1085 = vmatpush1.msra.mxu0 0.0
    %1086 = vmatprep.subr.mxu0 0.0
    %1087 = vmatpush1.msra.mxu0 0.0
    %1088 = vmatprep.subr.mxu0 0.0
    %1089 = vmatpush1.msra.mxu0 0.0
    %1090 = vmatprep.subr.mxu0 0.0
    %1091 = vmatpush1.msra.mxu0 0.0
    %1092 = vmatprep.subr.mxu0 0.0
    %1093 = vmatpush1.msra.mxu0 0.0
    %1094 = vmatprep.mubr.bf16.mxu0 0
    %1095 = vmatmul.mubr.bf16.gmra.mrb[0].mxu0 %v1028
    %v1096 = vpop.f32.mrb[0].mxu0
    %v1097 = vadd.f32 0.0, %v1096
    %v1098 = vpop.f32.mrb[0].mxu0
    %v1099 = vpop.f32.mrb[0].mxu0
    %v1100 = vpop.f32.mrb[0].mxu0
    %1101 = vdwg.mxu0
    %1103 = vrot.lane.b32.xlu0 %v1097, 96
    %v1104 = vpop.permute.xlu0 %1103
    %vm1106 = vcmask 1048320
    %1107 = vst.msk [vmem:[#allocation2] sm:$0xff] %vm1106, %v1104
    %v1108 = vld [vmem:[#allocation2] sm:$0xff]
    %v1109 = vld [vmem:[#allocation11] sm:$0xf]
    %v1110 = vld [vmem:[#allocation11 + $0x4] sm:$0xf]
    %v1111 = vld [vmem:[#allocation11 + $0x8] sm:$0xf]
    %v1112 = vld [vmem:[#allocation11 + $0xc] sm:$0xf]
    %v1113 = vld [vmem:[#allocation11 + $0x10] sm:$0xf]
    %v1114 = vld [vmem:[#allocation11 + $0x14] sm:$0xf]
    %v1115 = vld [vmem:[#allocation11 + $0x18] sm:$0xf]
    %v1116 = vld [vmem:[#allocation11 + $0x1c] sm:$0xf]
    %v1117 = vld [vmem:[#allocation11 + $0x20] sm:$0xf]
    %v1118 = vld [vmem:[#allocation11 + $0x24] sm:$0xf]
    %v1119 = vld [vmem:[#allocation11 + $0x28] sm:$0xf]
    %v1120 = vld [vmem:[#allocation11 + $0x2c] sm:$0xf]
    %v1121 = vld [vmem:[#allocation11 + $0x30] sm:$0xf]
    %v1122 = vld [vmem:[#allocation11 + $0x34] sm:$0xf]
    %v1123 = vld [vmem:[#allocation11 + $0x38] sm:$0xf]
    %v1124 = vld [vmem:[#allocation11 + $0x3c] sm:$0xf]
    %v1125 = vpack.c.bf16 %v1108, %v1108
    %v1126 = vld [vmem:[%s8] sm:$0x1]
    %v1128 = vlaneseq
    %v1129 = vshrl.u32 %v1128, 7
    %v1130 = vsub.s32 0, %v1129
    %v1131 = vrot.slane %v1126, %v1130
    %v1149 = vunpack.c.l.b16 %v1109
    %v1150 = vunpack.c.l.b16 %v1110
    %v1151 = vunpack.c.l.b16 %v1111
    %v1152 = vunpack.c.l.b16 %v1112
    %v1153 = vunpack.c.l.b16 %v1113
    %v1154 = vunpack.c.l.b16 %v1114
    %v1155 = vunpack.c.l.b16 %v1115
    %v1156 = vunpack.c.l.b16 %v1116
    %v1157 = vunpack.c.l.b16 %v1117
    %v1158 = vunpack.c.l.b16 %v1118
    %v1159 = vunpack.c.l.b16 %v1119
    %v1160 = vunpack.c.l.b16 %v1120
    %v1161 = vunpack.c.l.b16 %v1121
    %v1162 = vunpack.c.l.b16 %v1122
    %v1163 = vunpack.c.l.b16 %v1123
    %v1164 = vunpack.c.l.b16 %v1124
    %v1165 = vpack.c.b16 %v1150, %v1149
    %v1166 = vpack.c.b16 %v1152, %v1151
    %v1167 = vpack.c.b16 %v1154, %v1153
    %v1168 = vpack.c.b16 %v1156, %v1155
    %v1169 = vpack.c.b16 %v1158, %v1157
    %v1170 = vpack.c.b16 %v1160, %v1159
    %v1171 = vpack.c.b16 %v1162, %v1161
    %v1172 = vpack.c.b16 %v1164, %v1163
    %1181 = vmatprep.subr.bf16.mxu0 0
    %1182 = vmatpush1.bf16.msra.mxu0 %v1165
    %1183 = vmatprep.subr.bf16.mxu0 0
    %1184 = vmatpush1.bf16.msra.mxu0 %v1166
    %1185 = vmatprep.subr.bf16.mxu0 0
    %1186 = vmatpush1.bf16.msra.mxu0 %v1167
    %1187 = vmatprep.subr.bf16.mxu0 0
    %1188 = vmatpush1.bf16.msra.mxu0 %v1168
    %1189 = vmatprep.subr.bf16.mxu0 0
    %1190 = vmatpush1.bf16.msra.mxu0 %v1169
    %1191 = vmatprep.subr.bf16.mxu0 0
    %1192 = vmatpush1.bf16.msra.mxu0 %v1170
    %1193 = vmatprep.subr.bf16.mxu0 0
    %1194 = vmatpush1.bf16.msra.mxu0 %v1171
    %1195 = vmatprep.subr.bf16.mxu0 0
    %1196 = vmatpush1.bf16.msra.mxu0 %v1172
    %1197 = vmatprep.subr.bf16.mxu0 0
    %1198 = vmatpush1.bf16.msra.mxu0 0
    %1199 = vmatprep.subr.bf16.mxu0 0
    %1200 = vmatpush1.bf16.msra.mxu0 0
    %1201 = vmatprep.subr.bf16.mxu0 0
    %1202 = vmatpush1.bf16.msra.mxu0 0
    %1203 = vmatprep.subr.bf16.mxu0 0
    %1204 = vmatpush1.bf16.msra.mxu0 0
    %1205 = vmatprep.subr.bf16.mxu0 0
    %1206 = vmatpush1.bf16.msra.mxu0 0
    %1207 = vmatprep.subr.bf16.mxu0 0
    %1208 = vmatpush1.bf16.msra.mxu0 0
    %1209 = vmatprep.subr.bf16.mxu0 0
    %1210 = vmatpush1.bf16.msra.mxu0 0
    %1211 = vmatprep.subr.bf16.mxu0 0
    %1212 = vmatpush1.bf16.msra.mxu0 0
    %1213 = vmatprep.mubr.bf16.mxu0 0
    %1214 = vmatmul.mubr.bf16.gmra.mrb[0].mxu0 %v1125
    %v1215 = vpop.f32.mrb[0].mxu0
    %v1216 = vadd.f32 %v1131, %v1215
    %v1217 = vpop.f32.mrb[0].mxu0
    %v1218 = vpop.f32.mrb[0].mxu0
    %v1219 = vpop.f32.mrb[0].mxu0
    %1220 = vdwg.mxu0
    %v1222 = vcombine.high %v1216, %v1216
    %v1224 = vunpack.c.l.s4 1966171168
    %v1225 = vunpack.c.0.s8 %v1224
    %v1226 = vlaneseq
    %v1227 = vshrl.u32 %v1226, 7
    %v1228 = vsub.s32 %v1225, %v1227
    %v1229 = vrot.slane %v1216, %v1228
    %v1231 = vunpack.c.l.s4 1966171168
    %v1232 = vunpack.c.0.s8 %v1231
    %v1233 = vlaneseq
    %v1234 = vshrl.u32 %v1233, 7
    %v1235 = vsub.s32 %v1232, %v1234
    %v1236 = vrot.slane %v1222, %v1235
    %v1237 = vcombine.high %v1229, %v1229
    %v1238 = vcombine.high %v1236, %v1236
    %v1240 = vunpack.c.l.s4 1966171168
    %v1241 = vunpack.c.0.s8 %v1240
    %v1242 = vlaneseq
    %v1243 = vshrl.u32 %v1242, 7
    %v1244 = vsub.s32 %v1241, %v1243
    %v1245 = vrot.slane %v1229, %v1244
    %v1247 = vunpack.c.l.s4 1966171168
    %v1248 = vunpack.c.0.s8 %v1247
    %v1249 = vlaneseq
    %v1250 = vshrl.u32 %v1249, 7
    %v1251 = vsub.s32 %v1248, %v1250
    %v1252 = vrot.slane %v1236, %v1251
    %v1254 = vunpack.c.l.s4 1966171168
    %v1255 = vunpack.c.0.s8 %v1254
    %v1256 = vlaneseq
    %v1257 = vshrl.u32 %v1256, 7
    %v1258 = vsub.s32 %v1255, %v1257
    %v1259 = vrot.slane %v1237, %v1258
    %v1261 = vunpack.c.l.s4 1966171168
    %v1262 = vunpack.c.0.s8 %v1261
    %v1263 = vlaneseq
    %v1264 = vshrl.u32 %v1263, 7
    %v1265 = vsub.s32 %v1262, %v1264
    %v1266 = vrot.slane %v1238, %v1265
    %v1267 = vcombine.high %v1245, %v1245
    %v1268 = vcombine.high %v1252, %v1252
    %v1269 = vcombine.high %v1259, %v1259
    %v1270 = vcombine.high %v1266, %v1266
    %v1271 = vlaneseq
    %v1272 = vshrl.u32 %v1271, 7
    %v1273 = vsub.s32 0, %v1272
    %v1274 = vrot.slane %v1245, %v1273
    %v1275 = vlaneseq
    %v1276 = vshrl.u32 %v1275, 7
    %v1277 = vsub.s32 0, %v1276
    %v1278 = vrot.slane %v1259, %v1277
    %v1279 = vlaneseq
    %v1280 = vshrl.u32 %v1279, 7
    %v1281 = vsub.s32 0, %v1280
    %v1282 = vrot.slane %v1267, %v1281
    %v1283 = vlaneseq
    %v1284 = vshrl.u32 %v1283, 7
    %v1285 = vsub.s32 0, %v1284
    %v1286 = vrot.slane %v1269, %v1285
    %v1287 = vlaneseq
    %v1288 = vshrl.u32 %v1287, 7
    %v1289 = vsub.s32 0, %v1288
    %v1290 = vrot.slane %v1252, %v1289
    %v1291 = vlaneseq
    %v1292 = vshrl.u32 %v1291, 7
    %v1293 = vsub.s32 0, %v1292
    %v1294 = vrot.slane %v1266, %v1293
    %v1295 = vlaneseq
    %v1296 = vshrl.u32 %v1295, 7
    %v1297 = vsub.s32 0, %v1296
    %v1298 = vrot.slane %v1268, %v1297
    %v1299 = vlaneseq
    %v1300 = vshrl.u32 %v1299, 7
    %v1301 = vsub.s32 0, %v1300
    %v1302 = vrot.slane %v1270, %v1301
    %v1311 = vadd.f32 %v141, %v1274
    %v1312 = vadd.f32 %v142, %v1278
    %v1313 = vadd.f32 %v143, %v1282
    %v1314 = vadd.f32 %v144, %v1286
    %v1315 = vadd.f32 %v145, %v1290
    %v1316 = vadd.f32 %v146, %v1294
    %v1317 = vadd.f32 %v147, %v1298
    %v1318 = vadd.f32 %v148, %v1302
    %v1319 = vld [vmem:[#allocation12] sm:$0xf]
    %v1320 = vld [vmem:[#allocation12 + $0x4] sm:$0xf]
    %v1321 = vld [vmem:[#allocation12 + $0x8] sm:$0xf]
    %v1322 = vld [vmem:[#allocation12 + $0xc] sm:$0xf]
    %v1323 = vld [vmem:[#allocation12 + $0x10] sm:$0xf]
    %v1324 = vld [vmem:[#allocation12 + $0x14] sm:$0xf]
    %v1325 = vld [vmem:[#allocation12 + $0x18] sm:$0xf]
    %v1326 = vld [vmem:[#allocation12 + $0x1c] sm:$0xf]
    %v1327 = vld [vmem:[#allocation12 + $0x20] sm:$0xf]
    %v1328 = vld [vmem:[#allocation12 + $0x24] sm:$0xf]
    %v1329 = vld [vmem:[#allocation12 + $0x28] sm:$0xf]
    %v1330 = vld [vmem:[#allocation12 + $0x2c] sm:$0xf]
    %v1331 = vld [vmem:[#allocation12 + $0x30] sm:$0xf]
    %v1332 = vld [vmem:[#allocation12 + $0x34] sm:$0xf]
    %v1333 = vld [vmem:[#allocation12 + $0x38] sm:$0xf]
    %v1334 = vld [vmem:[#allocation12 + $0x3c] sm:$0xf]
    %v1335 = vpack.c.bf16 %v1312, %v1311
    %v1336 = vpack.c.bf16 %v1314, %v1313
    %v1337 = vpack.c.bf16 %v1316, %v1315
    %v1338 = vpack.c.bf16 %v1318, %v1317
    %v1339 = vld [vmem:[%s10] sm:$0x1]
    %v1341 = vlaneseq
    %v1342 = vshrl.u32 %v1341, 7
    %v1343 = vsub.s32 0, %v1342
    %v1344 = vrot.slane %v1339, %v1343
    %v1362 = vunpack.c.l.b16 %v1319
    %v1363 = vunpack.c.l.b16 %v1320
    %v1364 = vunpack.c.l.b16 %v1321
    %v1365 = vunpack.c.l.b16 %v1322
    %v1366 = vunpack.c.l.b16 %v1323
    %v1367 = vunpack.c.l.b16 %v1324
    %v1368 = vunpack.c.l.b16 %v1325
    %v1369 = vunpack.c.l.b16 %v1326
    %v1370 = vunpack.c.l.b16 %v1327
    %v1371 = vunpack.c.l.b16 %v1328
    %v1372 = vunpack.c.l.b16 %v1329
    %v1373 = vunpack.c.l.b16 %v1330
    %v1374 = vunpack.c.l.b16 %v1331
    %v1375 = vunpack.c.l.b16 %v1332
    %v1376 = vunpack.c.l.b16 %v1333
    %v1377 = vunpack.c.l.b16 %v1334
    %v1378 = vpack.c.b16 %v1363, %v1362
    %v1379 = vpack.c.b16 %v1365, %v1364
    %v1380 = vpack.c.b16 %v1367, %v1366
    %v1381 = vpack.c.b16 %v1369, %v1368
    %v1382 = vpack.c.b16 %v1371, %v1370
    %v1383 = vpack.c.b16 %v1373, %v1372
    %v1384 = vpack.c.b16 %v1375, %v1374
    %v1385 = vpack.c.b16 %v1377, %v1376
    %1394 = vmatprep.subr.bf16.mxu0 0
    %1395 = vmatpush1.bf16.msra.mxu0 %v1378
    %1396 = vmatprep.subr.bf16.mxu0 0
    %1397 = vmatpush1.bf16.msra.mxu0 %v1379
    %1398 = vmatprep.subr.bf16.mxu0 0
    %1399 = vmatpush1.bf16.msra.mxu0 %v1380
    %1400 = vmatprep.subr.bf16.mxu0 0
    %1401 = vmatpush1.bf16.msra.mxu0 %v1381
    %1402 = vmatprep.subr.bf16.mxu0 0
    %1403 = vmatpush1.bf16.msra.mxu0 %v1382
    %1404 = vmatprep.subr.bf16.mxu0 0
    %1405 = vmatpush1.bf16.msra.mxu0 %v1383
    %1406 = vmatprep.subr.bf16.mxu0 0
    %1407 = vmatpush1.bf16.msra.mxu0 %v1384
    %1408 = vmatprep.subr.bf16.mxu0 0
    %1409 = vmatpush1.bf16.msra.mxu0 %v1385
    %1410 = vmatprep.subr.bf16.mxu0 0
    %1411 = vmatpush1.bf16.msra.mxu0 0
    %1412 = vmatprep.subr.bf16.mxu0 0
    %1413 = vmatpush1.bf16.msra.mxu0 0
    %1414 = vmatprep.subr.bf16.mxu0 0
    %1415 = vmatpush1.bf16.msra.mxu0 0
    %1416 = vmatprep.subr.bf16.mxu0 0
    %1417 = vmatpush1.bf16.msra.mxu0 0
    %1418 = vmatprep.subr.bf16.mxu0 0
    %1419 = vmatpush1.bf16.msra.mxu0 0
    %1420 = vmatprep.subr.bf16.mxu0 0
    %1421 = vmatpush1.bf16.msra.mxu0 0
    %1422 = vmatprep.subr.bf16.mxu0 0
    %1423 = vmatpush1.bf16.msra.mxu0 0
    %1424 = vmatprep.subr.bf16.mxu0 0
    %1425 = vmatpush1.bf16.msra.mxu0 0
    %1426 = vmatprep.mubr.bf16.mxu0 0
    %1427 = vmatmul.mubr.bf16.gmra.mrb[0].mxu0 %v1335
    %v1428 = vpop.f32.mrb[0].mxu0
    %v1429 = vadd.f32 %v1344, %v1428
    %v1430 = vpop.f32.mrb[0].mxu0
    %v1431 = vpop.f32.mrb[0].mxu0
    %v1432 = vadd.f32 %v1344, %v1431
    %v1433 = vpop.f32.mrb[0].mxu0
    %1434 = vmatprep.mubr.bf16.mxu0 0
    %1435 = vmatmul.mubr.bf16.gmra.mrb[0].mxu0 %v1336
    %v1436 = vpop.f32.mrb[0].mxu0
    %v1437 = vadd.f32 %v1344, %v1436
    %v1438 = vpop.f32.mrb[0].mxu0
    %v1439 = vpop.f32.mrb[0].mxu0
    %v1440 = vadd.f32 %v1344, %v1439
    %v1441 = vpop.f32.mrb[0].mxu0
    %1442 = vmatprep.mubr.bf16.mxu0 0
    %1443 = vmatmul.mubr.bf16.gmra.mrb[0].mxu0 %v1337
    %v1444 = vpop.f32.mrb[0].mxu0
    %v1445 = vadd.f32 %v1344, %v1444
    %v1446 = vpop.f32.mrb[0].mxu0
    %v1447 = vpop.f32.mrb[0].mxu0
    %v1448 = vadd.f32 %v1344, %v1447
    %v1449 = vpop.f32.mrb[0].mxu0
    %1450 = vmatprep.mubr.bf16.mxu0 0
    %1451 = vmatmul.mubr.bf16.gmra.mrb[0].mxu0 %v1338
    %v1452 = vpop.f32.mrb[0].mxu0
    %v1453 = vadd.f32 %v1344, %v1452
    %v1454 = vpop.f32.mrb[0].mxu0
    %v1455 = vpop.f32.mrb[0].mxu0
    %v1456 = vadd.f32 %v1344, %v1455
    %v1457 = vpop.f32.mrb[0].mxu0
    %1458 = vdwg.mxu0
    %v1459 = vmax.f32 %v1429, 0.0
    %v1460 = vmax.f32 %v1432, 0.0
    %v1461 = vmax.f32 %v1437, 0.0
    %v1462 = vmax.f32 %v1440, 0.0
    %v1463 = vmax.f32 %v1445, 0.0
    %v1464 = vmax.f32 %v1448, 0.0
    %v1465 = vmax.f32 %v1453, 0.0
    %v1466 = vmax.f32 %v1456, 0.0
    %v1467 = vld [vmem:[#allocation14] sm:$0xf]
    %v1468 = vld [vmem:[#allocation14 + $0x4] sm:$0xf]
    %v1469 = vld [vmem:[#allocation14 + $0x8] sm:$0xf]
    %v1470 = vld [vmem:[#allocation14 + $0xc] sm:$0xf]
    %v1471 = vld [vmem:[#allocation14 + $0x10] sm:$0xf]
    %v1472 = vld [vmem:[#allocation14 + $0x14] sm:$0xf]
    %v1473 = vld [vmem:[#allocation14 + $0x18] sm:$0xf]
    %v1474 = vld [vmem:[#allocation14 + $0x1c] sm:$0xf]
    %v1475 = vld [vmem:[#allocation14 + $0x20] sm:$0xf]
    %v1476 = vld [vmem:[#allocation14 + $0x24] sm:$0xf]
    %v1477 = vld [vmem:[#allocation14 + $0x28] sm:$0xf]
    %v1478 = vld [vmem:[#allocation14 + $0x2c] sm:$0xf]
    %v1479 = vld [vmem:[#allocation14 + $0x30] sm:$0xf]
    %v1480 = vld [vmem:[#allocation14 + $0x34] sm:$0xf]
    %v1481 = vld [vmem:[#allocation14 + $0x38] sm:$0xf]
    %v1482 = vld [vmem:[#allocation14 + $0x3c] sm:$0xf]
    %v1483 = vpack.c.bf16 %v1460, %v1459
    %v1484 = vpack.c.bf16 %v1462, %v1461
    %v1485 = vpack.c.bf16 %v1464, %v1463
    %v1486 = vpack.c.bf16 %v1466, %v1465
    %v1487 = vld [vmem:[%s12] sm:$0x1]
    %v1489 = vlaneseq
    %v1490 = vshrl.u32 %v1489, 7
    %v1491 = vsub.s32 0, %v1490
    %v1492 = vrot.slane %v1487, %v1491
    %v1510 = vunpack.c.l.b16 %v1467
    %v1511 = vunpack.c.l.b16 %v1468
    %v1512 = vunpack.c.l.b16 %v1469
    %v1513 = vunpack.c.l.b16 %v1470
    %v1514 = vunpack.c.l.b16 %v1471
    %v1515 = vunpack.c.l.b16 %v1472
    %v1516 = vunpack.c.l.b16 %v1473
    %v1517 = vunpack.c.l.b16 %v1474
    %v1518 = vunpack.c.l.b16 %v1475
    %v1519 = vunpack.c.l.b16 %v1476
    %v1520 = vunpack.c.l.b16 %v1477
    %v1521 = vunpack.c.l.b16 %v1478
    %v1522 = vunpack.c.l.b16 %v1479
    %v1523 = vunpack.c.l.b16 %v1480
    %v1524 = vunpack.c.l.b16 %v1481
    %v1525 = vunpack.c.l.b16 %v1482
    %v1526 = vpack.c.b16 %v1511, %v1510
    %v1527 = vpack.c.b16 %v1513, %v1512
    %v1528 = vpack.c.b16 %v1515, %v1514
    %v1529 = vpack.c.b16 %v1517, %v1516
    %v1530 = vpack.c.b16 %v1519, %v1518
    %v1531 = vpack.c.b16 %v1521, %v1520
    %v1532 = vpack.c.b16 %v1523, %v1522
    %v1533 = vpack.c.b16 %v1525, %v1524
    %1542 = vmatprep.subr.bf16.mxu0 0
    %1543 = vmatpush1.bf16.msra.mxu0 %v1526
    %1544 = vmatprep.subr.bf16.mxu0 0
    %1545 = vmatpush1.bf16.msra.mxu0 %v1527
    %1546 = vmatprep.subr.bf16.mxu0 0
    %1547 = vmatpush1.bf16.msra.mxu0 %v1528
    %1548 = vmatprep.subr.bf16.mxu0 0
    %1549 = vmatpush1.bf16.msra.mxu0 %v1529
    %1550 = vmatprep.subr.bf16.mxu0 0
    %1551 = vmatpush1.bf16.msra.mxu0 %v1530
    %1552 = vmatprep.subr.bf16.mxu0 0
    %1553 = vmatpush1.bf16.msra.mxu0 %v1531
    %1554 = vmatprep.subr.bf16.mxu0 0
    %1555 = vmatpush1.bf16.msra.mxu0 %v1532
    %1556 = vmatprep.subr.bf16.mxu0 0
    %1557 = vmatpush1.bf16.msra.mxu0 %v1533
    %1558 = vmatprep.subr.bf16.mxu0 0
    %1559 = vmatpush1.bf16.msra.mxu0 0
    %1560 = vmatprep.subr.bf16.mxu0 0
    %1561 = vmatpush1.bf16.msra.mxu0 0
    %1562 = vmatprep.subr.bf16.mxu0 0
    %1563 = vmatpush1.bf16.msra.mxu0 0
    %1564 = vmatprep.subr.bf16.mxu0 0
    %1565 = vmatpush1.bf16.msra.mxu0 0
    %1566 = vmatprep.subr.bf16.mxu0 0
    %1567 = vmatpush1.bf16.msra.mxu0 0
    %1568 = vmatprep.subr.bf16.mxu0 0
    %1569 = vmatpush1.bf16.msra.mxu0 0
    %1570 = vmatprep.subr.bf16.mxu0 0
    %1571 = vmatpush1.bf16.msra.mxu0 0
    %1572 = vmatprep.subr.bf16.mxu0 0
    %1573 = vmatpush1.bf16.msra.mxu0 0
    %1574 = vmatprep.mubr.bf16.mxu0 0
    %1575 = vmatmul.mubr.bf16.gmra.mrb[0].mxu0 %v1483
    %v1576 = vpop.f32.mrb[0].mxu0
    %v1577 = vadd.f32 %v1492, %v1576
    %v1578 = vpop.f32.mrb[0].mxu0
    %v1579 = vpop.f32.mrb[0].mxu0
    %v1580 = vadd.f32 %v1492, %v1579
    %v1581 = vpop.f32.mrb[0].mxu0
    %1582 = vmatprep.mubr.bf16.mxu0 0
    %1583 = vmatmul.mubr.bf16.gmra.mrb[0].mxu0 %v1484
    %v1584 = vpop.f32.mrb[0].mxu0
    %v1585 = vadd.f32 %v1492, %v1584
    %v1586 = vpop.f32.mrb[0].mxu0
    %v1587 = vpop.f32.mrb[0].mxu0
    %v1588 = vadd.f32 %v1492, %v1587
    %v1589 = vpop.f32.mrb[0].mxu0
    %1590 = vmatprep.mubr.bf16.mxu0 0
    %1591 = vmatmul.mubr.bf16.gmra.mrb[0].mxu0 %v1485
    %v1592 = vpop.f32.mrb[0].mxu0
    %v1593 = vadd.f32 %v1492, %v1592
    %v1594 = vpop.f32.mrb[0].mxu0
    %v1595 = vpop.f32.mrb[0].mxu0
    %v1596 = vadd.f32 %v1492, %v1595
    %v1597 = vpop.f32.mrb[0].mxu0
    %1598 = vmatprep.mubr.bf16.mxu0 0
    %1599 = vmatmul.mubr.bf16.gmra.mrb[0].mxu0 %v1486
    %v1600 = vpop.f32.mrb[0].mxu0
    %v1601 = vadd.f32 %v1492, %v1600
    %v1602 = vpop.f32.mrb[0].mxu0
    %v1603 = vpop.f32.mrb[0].mxu0
    %v1604 = vadd.f32 %v1492, %v1603
    %v1605 = vpop.f32.mrb[0].mxu0
    %1606 = vdwg.mxu0
    %v1607 = vadd.f32 %v1311, %v1577
    %v1608 = vadd.f32 %v1312, %v1580
    %v1609 = vadd.f32 %v1313, %v1585
    %v1610 = vadd.f32 %v1314, %v1588
    %v1611 = vadd.f32 %v1315, %v1593
    %v1612 = vadd.f32 %v1316, %v1596
    %v1613 = vadd.f32 %v1317, %v1601
    %v1614 = vadd.f32 %v1318, %v1604
    %1615 = vst [vmem:[#allocation15] sm:$0xff] %v1607
    %1616 = vst [vmem:[#allocation15 + $0x8] sm:$0xff] %v1608
    %1617 = vst [vmem:[#allocation15 + $0x10] sm:$0xff] %v1609
    %1618 = vst [vmem:[#allocation15 + $0x18] sm:$0xff] %v1610
    %1619 = vst [vmem:[#allocation15 + $0x20] sm:$0xff] %v1611
    %1620 = vst [vmem:[#allocation15 + $0x28] sm:$0xff] %v1612
    %1621 = vst [vmem:[#allocation15 + $0x30] sm:$0xff] %v1613
    %1622 = vst [vmem:[#allocation15 + $0x38] sm:$0xff] %v1614
    // Predicated region
    $region82: #{tpu_custom_call.1} parent=1 // pred_check
      _
    $region83: #{tpu_custom_call.1} parent=1 // pred_check_branch
      %1624 = sbr.rel (0) target = $region85
    $region84: #{tpu_custom_call.1} parent=1 // pred_region
      %s1626 = ssub.s32 1024, 1024
      %1627 = vsyncadd [#allocation5], %s1626
      %s1628 = sshll.u32 [#allocation15], 4
      %s1629 = int_to_ptr.vmem [resolvable:$true] %s1628
      %1634 = dma.vmem_to_hbm [thread:$0]  %s1629, 1024, %s13, [#allocation5], 128, 128, 8
    $region85: #{tpu_custom_call.1} parent=1 // pred_fallthru
      _
    // Predicated region
    $region86: #{tpu_custom_call.1} parent=1 // pred_check
      _
    $region87: #{tpu_custom_call.1} parent=1 // pred_check_branch
      %1636 = sbr.rel (0) target = $region89
    $region88: #{tpu_custom_call.1} parent=1 // pred_region
      %1637 = dma.done [#allocation5], 1024
    $region89: #{tpu_custom_call.1} parent=1 // pred_fallthru
      _
    %1638 = vsyncpa [#allocation4], 1
    %1639 = vsyncpa [#allocation7], 1
    %1640 = vsyncpa [#allocation10], 1
    %1641 = vsyncpa [#allocation13], 1
    %1642 = vsyncpa [#allocation5], 1

</llo_original>
